<compile_context>
chip_gen: v5e
topology: v5e:2x2
jax: 0.10.0
libtpu: 0.0.40
codegen_flags: <defaults>
</compile_context>

<pallas_src>
import math
import jax
import jax.numpy as jnp
from jax import lax
from jax.experimental import pallas as pl
from jax.experimental.pallas import tpu as pltpu

# ------------------------- model hyper-parameters -------------------------
SEQ_LEN    = 8
STATE_SIZE = 3
EMB_SIZE   = 32
ATTN_SIZE  = 32                    # total attention projection size
N_HEADS    = 4
HEAD_DIM   = ATTN_SIZE // N_HEADS
N_LAYERS   = 2
MLP_HIDDEN = 4 * EMB_SIZE
T_TOTAL    = SEQ_LEN + STATE_SIZE
LN_EPS     = 1e-5
BATCH      = 2
NEG_INF    = -1e9


# ------------------------- fused forward kernel ----------------------------
def _fused_encoder_kernel(x_ref, const_ref, wqkv_ref, wo_ref, w1_ref, w2_ref, vec_ref,
                          o_ref):
    # Row layout: [B*SEQ_LEN sequence rows | B*STATE_SIZE state rows].
    # B*SEQ_LEN = 16 is a multiple of 8, so the concat below is sublane-tile aligned.
    n_seq = x_ref.shape[0]                       # B * SEQ_LEN
    bt = const_ref.shape[0]                      # B * T_TOTAL
    b = n_seq // SEQ_LEN

    # Append state vectors + positional encoding.  const_ref holds the positional
    # encoding for the sequence rows and (init_vec + pos) for the state rows.
    act = jnp.concatenate([x_ref[...] + const_ref[0:n_seq, :],
                           const_ref[n_seq:, :]], axis=0)            # (BT, E)

    # Additive cross-batch mask built in-kernel (0 within a batch element, -1e9 across).
    rid = lax.broadcasted_iota(jnp.int32, (bt, bt), 0)
    cid = lax.broadcasted_iota(jnp.int32, (bt, bt), 1)
    same = None
    for bb in range(b):                          # b is a static Python int
        r_in = (((rid >= bb * SEQ_LEN) & (rid < (bb + 1) * SEQ_LEN)) |
                ((rid >= n_seq + bb * STATE_SIZE) &
                 (rid < n_seq + (bb + 1) * STATE_SIZE)))
        c_in = (((cid >= bb * SEQ_LEN) & (cid < (bb + 1) * SEQ_LEN)) |
                ((cid >= n_seq + bb * STATE_SIZE) &
                 (cid < n_seq + (bb + 1) * STATE_SIZE)))
        t = r_in & c_in
        same = t if same is None else (same | t)
    mask = jnp.where(same, 0.0, NEG_INF).astype(jnp.float32)         # (BT, BT)

    def layer_norm(h, g, beta):
        mu = jnp.mean(h, axis=-1, keepdims=True)
        var = jnp.mean(jnp.square(h - mu), axis=-1, keepdims=True)
        return (h - mu) * lax.rsqrt(var + LN_EPS) * g + beta

    for l in range(N_LAYERS):                    # static unroll (N_LAYERS == 2)
        vec = vec_ref[l]                         # (8, 128) bias / LN vector slab
        bqkv = vec[0:1, 0:3 * ATTN_SIZE]
        bo   = vec[1:2, 0:EMB_SIZE]
        b1   = vec[2:3, 0:MLP_HIDDEN]
        b2   = vec[3:4, 0:EMB_SIZE]
        g1   = vec[4:5, 0:EMB_SIZE]
        be1  = vec[5:6, 0:EMB_SIZE]
        g2   = vec[6:7, 0:EMB_SIZE]
        be2  = vec[7:8, 0:EMB_SIZE]

        # ---- one fused QKV projection for all heads: (BT,E) x (E,3*ATTN) ----
        qkv = jnp.dot(act, wqkv_ref[l], preferred_element_type=jnp.float32) + bqkv
        q = qkv[:, 0:ATTN_SIZE]                  # softmax scale folded into Wq/bq
        k = qkv[:, ATTN_SIZE:2 * ATTN_SIZE]
        v = qkv[:, 2 * ATTN_SIZE:3 * ATTN_SIZE]

        # ---- per-head attention; heads live in static lane slices of width HEAD_DIM ----
        ctx_heads = []
        for h in range(N_HEADS):
            sl = slice(h * HEAD_DIM, (h + 1) * HEAD_DIM)
            s = jnp.einsum('td,sd->ts', q[:, sl], k[:, sl],
                           preferred_element_type=jnp.float32) + mask   # (BT, BT)
            s = s - jnp.max(s, axis=-1, keepdims=True)
            p = jnp.exp(s)
            p = p / jnp.sum(p, axis=-1, keepdims=True)                   # exact softmax
            ctx_heads.append(jnp.dot(p, v[:, sl],
                                     preferred_element_type=jnp.float32))
        ctx = jnp.concatenate(ctx_heads, axis=-1)                        # (BT, ATTN)

        # ---- single output projection over all heads: (BT,ATTN) x (ATTN,E) ----
        attn = jnp.dot(ctx, wo_ref[l], preferred_element_type=jnp.float32) + bo

        # ---- residual + LN, MLP(ReLU), residual + LN (post-LN block) ----
        h1 = layer_norm(act + attn, g1, be1)
        m = jnp.dot(h1, w1_ref[l], preferred_element_type=jnp.float32) + b1
        m = jnp.maximum(m, 0.0)
        m = jnp.dot(m, w2_ref[l], preferred_element_type=jnp.float32) + b2
        act = layer_norm(h1 + m, g2, be2)

    o_ref[...] = act


def append_encoder_forward(x, params):
    """x: (B, SEQ_LEN, EMB_SIZE) -> (B, SEQ_LEN + STATE_SIZE, EMB_SIZE)"""
    B = x.shape[0]
    n_seq_rows = B * SEQ_LEN
    n_rows = B * T_TOTAL

    x_flat = x.reshape(n_seq_rows, EMB_SIZE)

    # Constant slab: pos encoding for the sequence rows; (init_vec + pos) for state rows.
    pos_seq = jnp.tile(params["pos_enc"][:SEQ_LEN], (B, 1))                  # (B*S, E)
    state_rows = params["init_vec"] + params["pos_enc"][SEQ_LEN:]            # (St, E)
    const_slab = jnp.concatenate([pos_seq, jnp.tile(state_rows, (B, 1))], axis=0)

    # Pack all biases + LayerNorm params into one (L, 8, 128) slab (one DMA).
    def pad128(a):
        return jnp.pad(a, ((0, 0), (0, 128 - a.shape[-1])))
    vec_slab = jnp.stack(
        [pad128(params["bqkv"]), pad128(params["bo"]), pad128(params["b1"]),
         pad128(params["b2"]), pad128(params["g1"]), pad128(params["be1"]),
         pad128(params["g2"]), pad128(params["be2"])], axis=1)               # (L, 8, 128)

    inputs = (x_flat, const_slab,
              params["wqkv"], params["wo"], params["w1"], params["w2"], vec_slab)

    out_flat = pl.pallas_call(
        _fused_encoder_kernel,
        out_shape=jax.ShapeDtypeStruct((n_rows, EMB_SIZE), jnp.float32),
        in_specs=[pl.BlockSpec(memory_space=pltpu.MemorySpace.VMEM)] * len(inputs),
        out_specs=pl.BlockSpec(memory_space=pltpu.MemorySpace.VMEM),
    )(*inputs)

    seq = out_flat[:n_seq_rows].reshape(B, SEQ_LEN, EMB_SIZE)
    st = out_flat[n_seq_rows:].reshape(B, STATE_SIZE, EMB_SIZE)
    return jnp.concatenate([seq, st], axis=1)


# ------------------------- parameter initialization ------------------------
def sinusoidal_pos_encoding(n_pos, d_model):
    pos = jnp.arange(n_pos, dtype=jnp.float32)[:, None]
    i = jnp.arange(d_model)[None, :]
    angle_rates = 1.0 / jnp.power(10000.0, (2 * (i // 2)).astype(jnp.float32) / d_model)
    angles = pos * angle_rates
    return jnp.where(i % 2 == 0, jnp.sin(angles), jnp.cos(angles)).astype(jnp.float32)


def init_params(key):
    keys = jax.random.split(key, 1 + N_LAYERS)

    # AppendEncoder.init_vec: multi_init=False -> (1, 1, vec_size) / sqrt(vec_size)
    init_vec = jax.random.normal(keys[0], (1, EMB_SIZE), jnp.float32) / math.sqrt(EMB_SIZE)
    pos_enc = sinusoidal_pos_encoding(T_TOTAL, EMB_SIZE)

    def dense(k, fi, fo):
        return jax.random.normal(k, (fi, fo), jnp.float32) / math.sqrt(fi)

    scale = 1.0 / math.sqrt(HEAD_DIM)      # softmax scale folded into Wq AND bq

    acc = {k: [] for k in ("wqkv", "bqkv", "wo", "bo", "g1", "be1",
                           "w1", "b1", "w2", "b2", "g2", "be2")}
    for l in range(N_LAYERS):
        lk = jax.random.split(keys[1 + l], 6)
        wq = dense(lk[0], EMB_SIZE, ATTN_SIZE) * scale
        wk = dense(lk[1], EMB_SIZE, ATTN_SIZE)
        wv = dense(lk[2], EMB_SIZE, ATTN_SIZE)
        bq = jnp.zeros((ATTN_SIZE,), jnp.float32) * scale
        bk = jnp.zeros((ATTN_SIZE,), jnp.float32)
        bv = jnp.zeros((ATTN_SIZE,), jnp.float32)

        # column layout: [Q heads | K heads | V heads], head h at cols h*D:(h+1)*D
        acc["wqkv"].append(jnp.concatenate([wq, wk, wv], axis=1))            # (E, 3*ATTN)
        acc["bqkv"].append(jnp.concatenate([bq, bk, bv], axis=0))            # (3*ATTN,)
        acc["wo"].append(dense(lk[3], ATTN_SIZE, EMB_SIZE))                  # (ATTN, E)
        acc["bo"].append(jnp.zeros((EMB_SIZE,), jnp.float32))
        acc["g1"].append(jnp.ones((EMB_SIZE,), jnp.float32))
        acc["be1"].append(jnp.zeros((EMB_SIZE,), jnp.float32))
        acc["w1"].append(dense(lk[4], EMB_SIZE, MLP_HIDDEN))
        acc["b1"].append(jnp.zeros((MLP_HIDDEN,), jnp.float32))
        acc["w2"].append(dense(lk[5], MLP_HIDDEN, EMB_SIZE))
        acc["b2"].append(jnp.zeros((EMB_SIZE,), jnp.float32))
        acc["g2"].append(jnp.ones((EMB_SIZE,), jnp.float32))
        acc["be2"].append(jnp.zeros((EMB_SIZE,), jnp.float32))

    params = {k: jnp.stack(v, axis=0) for k, v in acc.items()}
    params["init_vec"] = init_vec
    params["pos_enc"] = pos_enc
    return params


# ------------------------- pure-JAX reference ------------------------------
def reference_forward(x, params):
    B = x.shape[0]
    init = jnp.broadcast_to(params["init_vec"][None], (B, STATE_SIZE, EMB_SIZE))
    act = jnp.concatenate([x, init], axis=1) + params["pos_enc"][None]

    def ln(h, g, b):
        mu = h.mean(-1, keepdims=True)
        var = ((h - mu) ** 2).mean(-1, keepdims=True)
        return (h - mu) / jnp.sqrt(var + LN_EPS) * g + b

    for l in range(N_LAYERS):
        qkv = act @ params["wqkv"][l] + params["bqkv"][l]                    # (B,T,3*ATTN)
        q = qkv[..., 0:ATTN_SIZE]
        k = qkv[..., ATTN_SIZE:2 * ATTN_SIZE]
        v = qkv[..., 2 * ATTN_SIZE:3 * ATTN_SIZE]
        heads = []
        for h in range(N_HEADS):
            sl = slice(h * HEAD_DIM, (h + 1) * HEAD_DIM)
            s = jnp.einsum('btd,bsd->bts', q[..., sl], k[..., sl])   # scale pre-folded
            p = jax.nn.softmax(s, axis=-1)
            heads.append(jnp.einsum('bts,bsd->btd', p, v[..., sl]))
        ctx = jnp.concatenate(heads, axis=-1)                                # (B,T,ATTN)
        attn = ctx @ params["wo"][l] + params["bo"][l]
        h1 = ln(act + attn, params["g1"][l], params["be1"][l])
        m = jnp.maximum(h1 @ params["w1"][l] + params["b1"][l], 0.0)
        m = m @ params["w2"][l] + params["b2"][l]
        act = ln(h1 + m, params["g2"][l], params["be2"][l])
    return act


# ------------------------- demo ---------------------------------------------
if __name__ == "__main__":
    key = jax.random.PRNGKey(0)
    kx, kp = jax.random.split(key)
    x = jax.random.normal(kx, (BATCH, SEQ_LEN, EMB_SIZE), jnp.float32)
    params = init_params(kp)

    fwd = jax.jit(append_encoder_forward)
    out = jax.block_until_ready(fwd(x, params))
    assert out.shape == (BATCH, T_TOTAL, EMB_SIZE), out.shape
    assert bool(jnp.all(jnp.isfinite(out)))

    ref = jax.block_until_ready(reference_forward(x, params))
    max_err = float(jnp.max(jnp.abs(out - ref)))
    assert max_err < 1e-4, f"max abs err vs reference = {max_err}"

    print("KERNEL_OK")
</pallas_src>

<mosaic_0001>
module attributes {stable_mosaic.version = 11 : i64} {
  func.func @_fused_encoder_kernel(%arg0: memref<16x32xf32, #tpu.memory_space<vmem>>, %arg1: memref<22x32xf32, #tpu.memory_space<vmem>>, %arg2: memref<2x32x96xf32, #tpu.memory_space<vmem>>, %arg3: memref<2x32x32xf32, #tpu.memory_space<vmem>>, %arg4: memref<2x32x128xf32, #tpu.memory_space<vmem>>, %arg5: memref<2x128x32xf32, #tpu.memory_space<vmem>>, %arg6: memref<2x8x128xf32, #tpu.memory_space<vmem>>, %arg7: memref<22x32xf32, #tpu.memory_space<vmem>>) attributes {dimension_semantics = [], scalar_prefetch = 0 : i64, scratch_operands = 0 : i64, tpu.core_type = #tpu.core_type<tc>} {
    %c0 = arith.constant 0 : index
    %c0_0 = arith.constant 0 : index
    %0 = vector.load %arg0[%c0, %c0_0] : memref<16x32xf32, #tpu.memory_space<vmem>>, vector<16x32xf32>
    %c0_1 = arith.constant 0 : index
    %c0_2 = arith.constant 0 : index
    %1 = vector.load %arg1[%c0_1, %c0_2] : memref<22x32xf32, #tpu.memory_space<vmem>>, vector<16x32xf32>
    %2 = arith.addf %0, %1 : vector<16x32xf32>
    %c16 = arith.constant 16 : index
    %c0_3 = arith.constant 0 : index
    %3 = vector.load %arg1[%c16, %c0_3] : memref<22x32xf32, #tpu.memory_space<vmem>>, vector<6x32xf32>
    %4 = tpu.concatenate %2, %3 in 0 : vector<16x32xf32>, vector<6x32xf32> -> vector<22x32xf32>
    %5 = tpu.iota {dimensions = array<i32: 0>} : vector<22x22xi32>
    %6 = tpu.iota {dimensions = array<i32: 1>} : vector<22x22xi32>
    %c0_i32 = arith.constant 0 : i32
    %7 = vector.broadcast %c0_i32 : i32 to vector<22x22xi32>
    %8 = arith.cmpi sge, %5, %7 : vector<22x22xi32>
    %c8_i32 = arith.constant 8 : i32
    %9 = vector.broadcast %c8_i32 : i32 to vector<22x22xi32>
    %10 = arith.cmpi slt, %5, %9 : vector<22x22xi32>
    %11 = arith.andi %8, %10 : vector<22x22xi1>
    %c16_i32 = arith.constant 16 : i32
    %12 = vector.broadcast %c16_i32 : i32 to vector<22x22xi32>
    %13 = arith.cmpi sge, %5, %12 : vector<22x22xi32>
    %c19_i32 = arith.constant 19 : i32
    %14 = vector.broadcast %c19_i32 : i32 to vector<22x22xi32>
    %15 = arith.cmpi slt, %5, %14 : vector<22x22xi32>
    %16 = arith.andi %13, %15 : vector<22x22xi1>
    %17 = arith.ori %11, %16 : vector<22x22xi1>
    %c0_i32_4 = arith.constant 0 : i32
    %18 = vector.broadcast %c0_i32_4 : i32 to vector<22x22xi32>
    %19 = arith.cmpi sge, %6, %18 : vector<22x22xi32>
    %c8_i32_5 = arith.constant 8 : i32
    %20 = vector.broadcast %c8_i32_5 : i32 to vector<22x22xi32>
    %21 = arith.cmpi slt, %6, %20 : vector<22x22xi32>
    %22 = arith.andi %19, %21 : vector<22x22xi1>
    %c16_i32_6 = arith.constant 16 : i32
    %23 = vector.broadcast %c16_i32_6 : i32 to vector<22x22xi32>
    %24 = arith.cmpi sge, %6, %23 : vector<22x22xi32>
    %c19_i32_7 = arith.constant 19 : i32
    %25 = vector.broadcast %c19_i32_7 : i32 to vector<22x22xi32>
    %26 = arith.cmpi slt, %6, %25 : vector<22x22xi32>
    %27 = arith.andi %24, %26 : vector<22x22xi1>
    %28 = arith.ori %22, %27 : vector<22x22xi1>
    %29 = arith.andi %17, %28 : vector<22x22xi1>
    %c8_i32_8 = arith.constant 8 : i32
    %30 = vector.broadcast %c8_i32_8 : i32 to vector<22x22xi32>
    %31 = arith.cmpi sge, %5, %30 : vector<22x22xi32>
    %c16_i32_9 = arith.constant 16 : i32
    %32 = vector.broadcast %c16_i32_9 : i32 to vector<22x22xi32>
    %33 = arith.cmpi slt, %5, %32 : vector<22x22xi32>
    %34 = arith.andi %31, %33 : vector<22x22xi1>
    %c19_i32_10 = arith.constant 19 : i32
    %35 = vector.broadcast %c19_i32_10 : i32 to vector<22x22xi32>
    %36 = arith.cmpi sge, %5, %35 : vector<22x22xi32>
    %c22_i32 = arith.constant 22 : i32
    %37 = vector.broadcast %c22_i32 : i32 to vector<22x22xi32>
    %38 = arith.cmpi slt, %5, %37 : vector<22x22xi32>
    %39 = arith.andi %36, %38 : vector<22x22xi1>
    %40 = arith.ori %34, %39 : vector<22x22xi1>
    %c8_i32_11 = arith.constant 8 : i32
    %41 = vector.broadcast %c8_i32_11 : i32 to vector<22x22xi32>
    %42 = arith.cmpi sge, %6, %41 : vector<22x22xi32>
    %c16_i32_12 = arith.constant 16 : i32
    %43 = vector.broadcast %c16_i32_12 : i32 to vector<22x22xi32>
    %44 = arith.cmpi slt, %6, %43 : vector<22x22xi32>
    %45 = arith.andi %42, %44 : vector<22x22xi1>
    %c19_i32_13 = arith.constant 19 : i32
    %46 = vector.broadcast %c19_i32_13 : i32 to vector<22x22xi32>
    %47 = arith.cmpi sge, %6, %46 : vector<22x22xi32>
    %c22_i32_14 = arith.constant 22 : i32
    %48 = vector.broadcast %c22_i32_14 : i32 to vector<22x22xi32>
    %49 = arith.cmpi slt, %6, %48 : vector<22x22xi32>
    %50 = arith.andi %47, %49 : vector<22x22xi1>
    %51 = arith.ori %45, %50 : vector<22x22xi1>
    %52 = arith.andi %40, %51 : vector<22x22xi1>
    %53 = arith.ori %29, %52 : vector<22x22xi1>
    %cst = arith.constant 0.000000e+00 : f32
    %cst_15 = arith.constant -1.000000e+09 : f32
    %54 = vector.broadcast %cst : f32 to vector<22x22xf32>
    %55 = vector.broadcast %cst_15 : f32 to vector<22x22xf32>
    %56 = arith.select %53, %54, %55 : vector<22x22xi1>, vector<22x22xf32>
    %c0_16 = arith.constant 0 : index
    %c0_17 = arith.constant 0 : index
    %c0_18 = arith.constant 0 : index
    %57 = vector.load %arg6[%c0_16, %c0_17, %c0_18] : memref<2x8x128xf32, #tpu.memory_space<vmem>>, vector<1x8x128xf32>
    %58 = vector.shape_cast %57 : vector<1x8x128xf32> to vector<8x128xf32>
    %59 = vector.extract_strided_slice %58 {offsets = [0, 0], sizes = [1, 96], strides = [1, 1]} : vector<8x128xf32> to vector<1x96xf32>
    %60 = vector.extract_strided_slice %58 {offsets = [1, 0], sizes = [1, 32], strides = [1, 1]} : vector<8x128xf32> to vector<1x32xf32>
    %61 = vector.extract_strided_slice %58 {offsets = [2, 0], sizes = [1, 128], strides = [1, 1]} : vector<8x128xf32> to vector<1x128xf32>
    %62 = vector.extract_strided_slice %58 {offsets = [3, 0], sizes = [1, 32], strides = [1, 1]} : vector<8x128xf32> to vector<1x32xf32>
    %63 = vector.extract_strided_slice %58 {offsets = [4, 0], sizes = [1, 32], strides = [1, 1]} : vector<8x128xf32> to vector<1x32xf32>
    %64 = vector.extract_strided_slice %58 {offsets = [5, 0], sizes = [1, 32], strides = [1, 1]} : vector<8x128xf32> to vector<1x32xf32>
    %65 = vector.extract_strided_slice %58 {offsets = [6, 0], sizes = [1, 32], strides = [1, 1]} : vector<8x128xf32> to vector<1x32xf32>
    %66 = vector.extract_strided_slice %58 {offsets = [7, 0], sizes = [1, 32], strides = [1, 1]} : vector<8x128xf32> to vector<1x32xf32>
    %c0_19 = arith.constant 0 : index
    %c0_20 = arith.constant 0 : index
    %c0_21 = arith.constant 0 : index
    %67 = vector.load %arg2[%c0_19, %c0_20, %c0_21] : memref<2x32x96xf32, #tpu.memory_space<vmem>>, vector<1x32x96xf32>
    %68 = vector.shape_cast %67 : vector<1x32x96xf32> to vector<32x96xf32>
    %cst_22 = arith.constant dense<0.000000e+00> : vector<22x96xf32>
    %69 = tpu.matmul %4, %68, %cst_22 {dimension_numbers = #tpu.dot_dimension_numbers<[1], [0], [0], [1], [0, 0, 1, 1], [], []>} : vector<22x32xf32>, vector<32x96xf32>, vector<22x96xf32> -> vector<22x96xf32>
    %70 = vector.broadcast %59 : vector<1x96xf32> to vector<22x96xf32>
    %71 = arith.addf %69, %70 : vector<22x96xf32>
    %72 = vector.extract_strided_slice %71 {offsets = [0, 0], sizes = [22, 32], strides = [1, 1]} : vector<22x96xf32> to vector<22x32xf32>
    %73 = vector.extract_strided_slice %71 {offsets = [0, 32], sizes = [22, 32], strides = [1, 1]} : vector<22x96xf32> to vector<22x32xf32>
    %74 = vector.extract_strided_slice %71 {offsets = [0, 64], sizes = [22, 32], strides = [1, 1]} : vector<22x96xf32> to vector<22x32xf32>
    %75 = vector.extract_strided_slice %72 {offsets = [0, 0], sizes = [22, 8], strides = [1, 1]} : vector<22x32xf32> to vector<22x8xf32>
    %76 = vector.extract_strided_slice %73 {offsets = [0, 0], sizes = [22, 8], strides = [1, 1]} : vector<22x32xf32> to vector<22x8xf32>
    "tpu.trace_start"() <{level = 10 : i32, message = "td,sd->ts"}> : () -> ()
    %cst_23 = arith.constant dense<0.000000e+00> : vector<22x22xf32>
    %77 = tpu.matmul %75, %76, %cst_23 {dimension_numbers = #tpu.dot_dimension_numbers<[1], [1], [0], [0], [0, 0, 1, 0], [], []>} : vector<22x8xf32>, vector<22x8xf32>, vector<22x22xf32> -> vector<22x22xf32>
    "tpu.trace_stop"() : () -> ()
    %78 = arith.addf %77, %56 : vector<22x22xf32>
    %cst_24 = arith.constant dense<0xFF800000> : vector<22xf32>
    %79 = vector.multi_reduction <maximumf>, %78, %cst_24 [1] : vector<22x22xf32> to vector<22xf32>
    %80 = vector.shape_cast %79 : vector<22xf32> to vector<22x1xf32>
    %81 = vector.broadcast %80 : vector<22x1xf32> to vector<22x22xf32>
    %82 = arith.subf %78, %81 : vector<22x22xf32>
    %83 = math.exp %82 : vector<22x22xf32>
    %cst_25 = arith.constant dense<0.000000e+00> : vector<22xf32>
    %84 = vector.multi_reduction <add>, %83, %cst_25 [1] : vector<22x22xf32> to vector<22xf32>
    %85 = vector.shape_cast %84 : vector<22xf32> to vector<22x1xf32>
    %86 = vector.broadcast %85 : vector<22x1xf32> to vector<22x22xf32>
    %87 = arith.divf %83, %86 : vector<22x22xf32>
    %88 = vector.extract_strided_slice %74 {offsets = [0, 0], sizes = [22, 8], strides = [1, 1]} : vector<22x32xf32> to vector<22x8xf32>
    %cst_26 = arith.constant dense<0.000000e+00> : vector<22x8xf32>
    %89 = tpu.matmul %87, %88, %cst_26 {dimension_numbers = #tpu.dot_dimension_numbers<[1], [0], [0], [1], [0, 0, 1, 1], [], []>} : vector<22x22xf32>, vector<22x8xf32>, vector<22x8xf32> -> vector<22x8xf32>
    %90 = vector.extract_strided_slice %72 {offsets = [0, 8], sizes = [22, 8], strides = [1, 1]} : vector<22x32xf32> to vector<22x8xf32>
    %91 = vector.extract_strided_slice %73 {offsets = [0, 8], sizes = [22, 8], strides = [1, 1]} : vector<22x32xf32> to vector<22x8xf32>
    "tpu.trace_start"() <{level = 10 : i32, message = "td,sd->ts"}> : () -> ()
    %cst_27 = arith.constant dense<0.000000e+00> : vector<22x22xf32>
    %92 = tpu.matmul %90, %91, %cst_27 {dimension_numbers = #tpu.dot_dimension_numbers<[1], [1], [0], [0], [0, 0, 1, 0], [], []>} : vector<22x8xf32>, vector<22x8xf32>, vector<22x22xf32> -> vector<22x22xf32>
    "tpu.trace_stop"() : () -> ()
    %93 = arith.addf %92, %56 : vector<22x22xf32>
    %cst_28 = arith.constant dense<0xFF800000> : vector<22xf32>
    %94 = vector.multi_reduction <maximumf>, %93, %cst_28 [1] : vector<22x22xf32> to vector<22xf32>
    %95 = vector.shape_cast %94 : vector<22xf32> to vector<22x1xf32>
    %96 = vector.broadcast %95 : vector<22x1xf32> to vector<22x22xf32>
    %97 = arith.subf %93, %96 : vector<22x22xf32>
    %98 = math.exp %97 : vector<22x22xf32>
    %cst_29 = arith.constant dense<0.000000e+00> : vector<22xf32>
    %99 = vector.multi_reduction <add>, %98, %cst_29 [1] : vector<22x22xf32> to vector<22xf32>
    %100 = vector.shape_cast %99 : vector<22xf32> to vector<22x1xf32>
    %101 = vector.broadcast %100 : vector<22x1xf32> to vector<22x22xf32>
    %102 = arith.divf %98, %101 : vector<22x22xf32>
    %103 = vector.extract_strided_slice %74 {offsets = [0, 8], sizes = [22, 8], strides = [1, 1]} : vector<22x32xf32> to vector<22x8xf32>
    %cst_30 = arith.constant dense<0.000000e+00> : vector<22x8xf32>
    %104 = tpu.matmul %102, %103, %cst_30 {dimension_numbers = #tpu.dot_dimension_numbers<[1], [0], [0], [1], [0, 0, 1, 1], [], []>} : vector<22x22xf32>, vector<22x8xf32>, vector<22x8xf32> -> vector<22x8xf32>
    %105 = vector.extract_strided_slice %72 {offsets = [0, 16], sizes = [22, 8], strides = [1, 1]} : vector<22x32xf32> to vector<22x8xf32>
    %106 = vector.extract_strided_slice %73 {offsets = [0, 16], sizes = [22, 8], strides = [1, 1]} : vector<22x32xf32> to vector<22x8xf32>
    "tpu.trace_start"() <{level = 10 : i32, message = "td,sd->ts"}> : () -> ()
    %cst_31 = arith.constant dense<0.000000e+00> : vector<22x22xf32>
    %107 = tpu.matmul %105, %106, %cst_31 {dimension_numbers = #tpu.dot_dimension_numbers<[1], [1], [0], [0], [0, 0, 1, 0], [], []>} : vector<22x8xf32>, vector<22x8xf32>, vector<22x22xf32> -> vector<22x22xf32>
    "tpu.trace_stop"() : () -> ()
    %108 = arith.addf %107, %56 : vector<22x22xf32>
    %cst_32 = arith.constant dense<0xFF800000> : vector<22xf32>
    %109 = vector.multi_reduction <maximumf>, %108, %cst_32 [1] : vector<22x22xf32> to vector<22xf32>
    %110 = vector.shape_cast %109 : vector<22xf32> to vector<22x1xf32>
    %111 = vector.broadcast %110 : vector<22x1xf32> to vector<22x22xf32>
    %112 = arith.subf %108, %111 : vector<22x22xf32>
    %113 = math.exp %112 : vector<22x22xf32>
    %cst_33 = arith.constant dense<0.000000e+00> : vector<22xf32>
    %114 = vector.multi_reduction <add>, %113, %cst_33 [1] : vector<22x22xf32> to vector<22xf32>
    %115 = vector.shape_cast %114 : vector<22xf32> to vector<22x1xf32>
    %116 = vector.broadcast %115 : vector<22x1xf32> to vector<22x22xf32>
    %117 = arith.divf %113, %116 : vector<22x22xf32>
    %118 = vector.extract_strided_slice %74 {offsets = [0, 16], sizes = [22, 8], strides = [1, 1]} : vector<22x32xf32> to vector<22x8xf32>
    %cst_34 = arith.constant dense<0.000000e+00> : vector<22x8xf32>
    %119 = tpu.matmul %117, %118, %cst_34 {dimension_numbers = #tpu.dot_dimension_numbers<[1], [0], [0], [1], [0, 0, 1, 1], [], []>} : vector<22x22xf32>, vector<22x8xf32>, vector<22x8xf32> -> vector<22x8xf32>
    %120 = vector.extract_strided_slice %72 {offsets = [0, 24], sizes = [22, 8], strides = [1, 1]} : vector<22x32xf32> to vector<22x8xf32>
    %121 = vector.extract_strided_slice %73 {offsets = [0, 24], sizes = [22, 8], strides = [1, 1]} : vector<22x32xf32> to vector<22x8xf32>
    "tpu.trace_start"() <{level = 10 : i32, message = "td,sd->ts"}> : () -> ()
    %cst_35 = arith.constant dense<0.000000e+00> : vector<22x22xf32>
    %122 = tpu.matmul %120, %121, %cst_35 {dimension_numbers = #tpu.dot_dimension_numbers<[1], [1], [0], [0], [0, 0, 1, 0], [], []>} : vector<22x8xf32>, vector<22x8xf32>, vector<22x22xf32> -> vector<22x22xf32>
    "tpu.trace_stop"() : () -> ()
    %123 = arith.addf %122, %56 : vector<22x22xf32>
    %cst_36 = arith.constant dense<0xFF800000> : vector<22xf32>
    %124 = vector.multi_reduction <maximumf>, %123, %cst_36 [1] : vector<22x22xf32> to vector<22xf32>
    %125 = vector.shape_cast %124 : vector<22xf32> to vector<22x1xf32>
    %126 = vector.broadcast %125 : vector<22x1xf32> to vector<22x22xf32>
    %127 = arith.subf %123, %126 : vector<22x22xf32>
    %128 = math.exp %127 : vector<22x22xf32>
    %cst_37 = arith.constant dense<0.000000e+00> : vector<22xf32>
    %129 = vector.multi_reduction <add>, %128, %cst_37 [1] : vector<22x22xf32> to vector<22xf32>
    %130 = vector.shape_cast %129 : vector<22xf32> to vector<22x1xf32>
    %131 = vector.broadcast %130 : vector<22x1xf32> to vector<22x22xf32>
    %132 = arith.divf %128, %131 : vector<22x22xf32>
    %133 = vector.extract_strided_slice %74 {offsets = [0, 24], sizes = [22, 8], strides = [1, 1]} : vector<22x32xf32> to vector<22x8xf32>
    %cst_38 = arith.constant dense<0.000000e+00> : vector<22x8xf32>
    %134 = tpu.matmul %132, %133, %cst_38 {dimension_numbers = #tpu.dot_dimension_numbers<[1], [0], [0], [1], [0, 0, 1, 1], [], []>} : vector<22x22xf32>, vector<22x8xf32>, vector<22x8xf32> -> vector<22x8xf32>
    %135 = tpu.concatenate %89, %104, %119, %134 in 1 : vector<22x8xf32>, vector<22x8xf32>, vector<22x8xf32>, vector<22x8xf32> -> vector<22x32xf32>
    %c0_39 = arith.constant 0 : index
    %c0_40 = arith.constant 0 : index
    %c0_41 = arith.constant 0 : index
    %136 = vector.load %arg3[%c0_39, %c0_40, %c0_41] : memref<2x32x32xf32, #tpu.memory_space<vmem>>, vector<1x32x32xf32>
    %137 = vector.shape_cast %136 : vector<1x32x32xf32> to vector<32x32xf32>
    %cst_42 = arith.constant dense<0.000000e+00> : vector<22x32xf32>
    %138 = tpu.matmul %135, %137, %cst_42 {dimension_numbers = #tpu.dot_dimension_numbers<[1], [0], [0], [1], [0, 0, 1, 1], [], []>} : vector<22x32xf32>, vector<32x32xf32>, vector<22x32xf32> -> vector<22x32xf32>
    %139 = vector.broadcast %60 : vector<1x32xf32> to vector<22x32xf32>
    %140 = arith.addf %138, %139 : vector<22x32xf32>
    %141 = arith.addf %4, %140 : vector<22x32xf32>
    %cst_43 = arith.constant dense<0.000000e+00> : vector<22xf32>
    %142 = vector.multi_reduction <add>, %141, %cst_43 [1] : vector<22x32xf32> to vector<22xf32>
    %143 = vector.shape_cast %142 : vector<22xf32> to vector<22x1xf32>
    %cst_44 = arith.constant 3.200000e+01 : f32
    %144 = vector.broadcast %cst_44 : f32 to vector<22x1xf32>
    %145 = arith.divf %143, %144 : vector<22x1xf32>
    %146 = vector.broadcast %145 : vector<22x1xf32> to vector<22x32xf32>
    %147 = arith.subf %141, %146 : vector<22x32xf32>
    %148 = arith.mulf %147, %147 : vector<22x32xf32>
    %cst_45 = arith.constant dense<0.000000e+00> : vector<22xf32>
    %149 = vector.multi_reduction <add>, %148, %cst_45 [1] : vector<22x32xf32> to vector<22xf32>
    %150 = vector.shape_cast %149 : vector<22xf32> to vector<22x1xf32>
    %cst_46 = arith.constant 3.200000e+01 : f32
    %151 = vector.broadcast %cst_46 : f32 to vector<22x1xf32>
    %152 = arith.divf %150, %151 : vector<22x1xf32>
    %153 = vector.broadcast %145 : vector<22x1xf32> to vector<22x32xf32>
    %154 = arith.subf %141, %153 : vector<22x32xf32>
    %cst_47 = arith.constant 9.99999974E-6 : f32
    %155 = vector.broadcast %cst_47 : f32 to vector<22x1xf32>
    %156 = arith.addf %152, %155 : vector<22x1xf32>
    %157 = math.rsqrt %156 : vector<22x1xf32>
    %158 = vector.broadcast %157 : vector<22x1xf32> to vector<22x32xf32>
    %159 = arith.mulf %154, %158 : vector<22x32xf32>
    %160 = vector.broadcast %63 : vector<1x32xf32> to vector<22x32xf32>
    %161 = arith.mulf %159, %160 : vector<22x32xf32>
    %162 = vector.broadcast %64 : vector<1x32xf32> to vector<22x32xf32>
    %163 = arith.addf %161, %162 : vector<22x32xf32>
    %c0_48 = arith.constant 0 : index
    %c0_49 = arith.constant 0 : index
    %c0_50 = arith.constant 0 : index
    %164 = vector.load %arg4[%c0_48, %c0_49, %c0_50] : memref<2x32x128xf32, #tpu.memory_space<vmem>>, vector<1x32x128xf32>
    %165 = vector.shape_cast %164 : vector<1x32x128xf32> to vector<32x128xf32>
    %cst_51 = arith.constant dense<0.000000e+00> : vector<22x128xf32>
    %166 = tpu.matmul %163, %165, %cst_51 {dimension_numbers = #tpu.dot_dimension_numbers<[1], [0], [0], [1], [0, 0, 1, 1], [], []>} : vector<22x32xf32>, vector<32x128xf32>, vector<22x128xf32> -> vector<22x128xf32>
    %167 = vector.broadcast %61 : vector<1x128xf32> to vector<22x128xf32>
    %168 = arith.addf %166, %167 : vector<22x128xf32>
    %cst_52 = arith.constant 0.000000e+00 : f32
    %169 = vector.broadcast %cst_52 : f32 to vector<22x128xf32>
    %170 = arith.maximumf %168, %169 : vector<22x128xf32>
    %c0_53 = arith.constant 0 : index
    %c0_54 = arith.constant 0 : index
    %c0_55 = arith.constant 0 : index
    %171 = vector.load %arg5[%c0_53, %c0_54, %c0_55] : memref<2x128x32xf32, #tpu.memory_space<vmem>>, vector<1x128x32xf32>
    %172 = vector.shape_cast %171 : vector<1x128x32xf32> to vector<128x32xf32>
    %cst_56 = arith.constant dense<0.000000e+00> : vector<22x32xf32>
    %173 = tpu.matmul %170, %172, %cst_56 {dimension_numbers = #tpu.dot_dimension_numbers<[1], [0], [0], [1], [0, 0, 1, 1], [], []>} : vector<22x128xf32>, vector<128x32xf32>, vector<22x32xf32> -> vector<22x32xf32>
    %174 = vector.broadcast %62 : vector<1x32xf32> to vector<22x32xf32>
    %175 = arith.addf %173, %174 : vector<22x32xf32>
    %176 = arith.addf %163, %175 : vector<22x32xf32>
    %cst_57 = arith.constant dense<0.000000e+00> : vector<22xf32>
    %177 = vector.multi_reduction <add>, %176, %cst_57 [1] : vector<22x32xf32> to vector<22xf32>
    %178 = vector.shape_cast %177 : vector<22xf32> to vector<22x1xf32>
    %cst_58 = arith.constant 3.200000e+01 : f32
    %179 = vector.broadcast %cst_58 : f32 to vector<22x1xf32>
    %180 = arith.divf %178, %179 : vector<22x1xf32>
    %181 = vector.broadcast %180 : vector<22x1xf32> to vector<22x32xf32>
    %182 = arith.subf %176, %181 : vector<22x32xf32>
    %183 = arith.mulf %182, %182 : vector<22x32xf32>
    %cst_59 = arith.constant dense<0.000000e+00> : vector<22xf32>
    %184 = vector.multi_reduction <add>, %183, %cst_59 [1] : vector<22x32xf32> to vector<22xf32>
    %185 = vector.shape_cast %184 : vector<22xf32> to vector<22x1xf32>
    %cst_60 = arith.constant 3.200000e+01 : f32
    %186 = vector.broadcast %cst_60 : f32 to vector<22x1xf32>
    %187 = arith.divf %185, %186 : vector<22x1xf32>
    %188 = vector.broadcast %180 : vector<22x1xf32> to vector<22x32xf32>
    %189 = arith.subf %176, %188 : vector<22x32xf32>
    %cst_61 = arith.constant 9.99999974E-6 : f32
    %190 = vector.broadcast %cst_61 : f32 to vector<22x1xf32>
    %191 = arith.addf %187, %190 : vector<22x1xf32>
    %192 = math.rsqrt %191 : vector<22x1xf32>
    %193 = vector.broadcast %192 : vector<22x1xf32> to vector<22x32xf32>
    %194 = arith.mulf %189, %193 : vector<22x32xf32>
    %195 = vector.broadcast %65 : vector<1x32xf32> to vector<22x32xf32>
    %196 = arith.mulf %194, %195 : vector<22x32xf32>
    %197 = vector.broadcast %66 : vector<1x32xf32> to vector<22x32xf32>
    %198 = arith.addf %196, %197 : vector<22x32xf32>
    %c1 = arith.constant 1 : index
    %c0_62 = arith.constant 0 : index
    %c0_63 = arith.constant 0 : index
    %199 = vector.load %arg6[%c1, %c0_62, %c0_63] : memref<2x8x128xf32, #tpu.memory_space<vmem>>, vector<1x8x128xf32>
    %200 = vector.shape_cast %199 : vector<1x8x128xf32> to vector<8x128xf32>
    %201 = vector.extract_strided_slice %200 {offsets = [0, 0], sizes = [1, 96], strides = [1, 1]} : vector<8x128xf32> to vector<1x96xf32>
    %202 = vector.extract_strided_slice %200 {offsets = [1, 0], sizes = [1, 32], strides = [1, 1]} : vector<8x128xf32> to vector<1x32xf32>
    %203 = vector.extract_strided_slice %200 {offsets = [2, 0], sizes = [1, 128], strides = [1, 1]} : vector<8x128xf32> to vector<1x128xf32>
    %204 = vector.extract_strided_slice %200 {offsets = [3, 0], sizes = [1, 32], strides = [1, 1]} : vector<8x128xf32> to vector<1x32xf32>
    %205 = vector.extract_strided_slice %200 {offsets = [4, 0], sizes = [1, 32], strides = [1, 1]} : vector<8x128xf32> to vector<1x32xf32>
    %206 = vector.extract_strided_slice %200 {offsets = [5, 0], sizes = [1, 32], strides = [1, 1]} : vector<8x128xf32> to vector<1x32xf32>
    %207 = vector.extract_strided_slice %200 {offsets = [6, 0], sizes = [1, 32], strides = [1, 1]} : vector<8x128xf32> to vector<1x32xf32>
    %208 = vector.extract_strided_slice %200 {offsets = [7, 0], sizes = [1, 32], strides = [1, 1]} : vector<8x128xf32> to vector<1x32xf32>
    %c1_64 = arith.constant 1 : index
    %c0_65 = arith.constant 0 : index
    %c0_66 = arith.constant 0 : index
    %209 = vector.load %arg2[%c1_64, %c0_65, %c0_66] : memref<2x32x96xf32, #tpu.memory_space<vmem>>, vector<1x32x96xf32>
    %210 = vector.shape_cast %209 : vector<1x32x96xf32> to vector<32x96xf32>
    %cst_67 = arith.constant dense<0.000000e+00> : vector<22x96xf32>
    %211 = tpu.matmul %198, %210, %cst_67 {dimension_numbers = #tpu.dot_dimension_numbers<[1], [0], [0], [1], [0, 0, 1, 1], [], []>} : vector<22x32xf32>, vector<32x96xf32>, vector<22x96xf32> -> vector<22x96xf32>
    %212 = vector.broadcast %201 : vector<1x96xf32> to vector<22x96xf32>
    %213 = arith.addf %211, %212 : vector<22x96xf32>
    %214 = vector.extract_strided_slice %213 {offsets = [0, 0], sizes = [22, 32], strides = [1, 1]} : vector<22x96xf32> to vector<22x32xf32>
    %215 = vector.extract_strided_slice %213 {offsets = [0, 32], sizes = [22, 32], strides = [1, 1]} : vector<22x96xf32> to vector<22x32xf32>
    %216 = vector.extract_strided_slice %213 {offsets = [0, 64], sizes = [22, 32], strides = [1, 1]} : vector<22x96xf32> to vector<22x32xf32>
    %217 = vector.extract_strided_slice %214 {offsets = [0, 0], sizes = [22, 8], strides = [1, 1]} : vector<22x32xf32> to vector<22x8xf32>
    %218 = vector.extract_strided_slice %215 {offsets = [0, 0], sizes = [22, 8], strides = [1, 1]} : vector<22x32xf32> to vector<22x8xf32>
    "tpu.trace_start"() <{level = 10 : i32, message = "td,sd->ts"}> : () -> ()
    %cst_68 = arith.constant dense<0.000000e+00> : vector<22x22xf32>
    %219 = tpu.matmul %217, %218, %cst_68 {dimension_numbers = #tpu.dot_dimension_numbers<[1], [1], [0], [0], [0, 0, 1, 0], [], []>} : vector<22x8xf32>, vector<22x8xf32>, vector<22x22xf32> -> vector<22x22xf32>
    "tpu.trace_stop"() : () -> ()
    %220 = arith.addf %219, %56 : vector<22x22xf32>
    %cst_69 = arith.constant dense<0xFF800000> : vector<22xf32>
    %221 = vector.multi_reduction <maximumf>, %220, %cst_69 [1] : vector<22x22xf32> to vector<22xf32>
    %222 = vector.shape_cast %221 : vector<22xf32> to vector<22x1xf32>
    %223 = vector.broadcast %222 : vector<22x1xf32> to vector<22x22xf32>
    %224 = arith.subf %220, %223 : vector<22x22xf32>
    %225 = math.exp %224 : vector<22x22xf32>
    %cst_70 = arith.constant dense<0.000000e+00> : vector<22xf32>
    %226 = vector.multi_reduction <add>, %225, %cst_70 [1] : vector<22x22xf32> to vector<22xf32>
    %227 = vector.shape_cast %226 : vector<22xf32> to vector<22x1xf32>
    %228 = vector.broadcast %227 : vector<22x1xf32> to vector<22x22xf32>
    %229 = arith.divf %225, %228 : vector<22x22xf32>
    %230 = vector.extract_strided_slice %216 {offsets = [0, 0], sizes = [22, 8], strides = [1, 1]} : vector<22x32xf32> to vector<22x8xf32>
    %cst_71 = arith.constant dense<0.000000e+00> : vector<22x8xf32>
    %231 = tpu.matmul %229, %230, %cst_71 {dimension_numbers = #tpu.dot_dimension_numbers<[1], [0], [0], [1], [0, 0, 1, 1], [], []>} : vector<22x22xf32>, vector<22x8xf32>, vector<22x8xf32> -> vector<22x8xf32>
    %232 = vector.extract_strided_slice %214 {offsets = [0, 8], sizes = [22, 8], strides = [1, 1]} : vector<22x32xf32> to vector<22x8xf32>
    %233 = vector.extract_strided_slice %215 {offsets = [0, 8], sizes = [22, 8], strides = [1, 1]} : vector<22x32xf32> to vector<22x8xf32>
    "tpu.trace_start"() <{level = 10 : i32, message = "td,sd->ts"}> : () -> ()
    %cst_72 = arith.constant dense<0.000000e+00> : vector<22x22xf32>
    %234 = tpu.matmul %232, %233, %cst_72 {dimension_numbers = #tpu.dot_dimension_numbers<[1], [1], [0], [0], [0, 0, 1, 0], [], []>} : vector<22x8xf32>, vector<22x8xf32>, vector<22x22xf32> -> vector<22x22xf32>
    "tpu.trace_stop"() : () -> ()
    %235 = arith.addf %234, %56 : vector<22x22xf32>
    %cst_73 = arith.constant dense<0xFF800000> : vector<22xf32>
    %236 = vector.multi_reduction <maximumf>, %235, %cst_73 [1] : vector<22x22xf32> to vector<22xf32>
    %237 = vector.shape_cast %236 : vector<22xf32> to vector<22x1xf32>
    %238 = vector.broadcast %237 : vector<22x1xf32> to vector<22x22xf32>
    %239 = arith.subf %235, %238 : vector<22x22xf32>
    %240 = math.exp %239 : vector<22x22xf32>
    %cst_74 = arith.constant dense<0.000000e+00> : vector<22xf32>
    %241 = vector.multi_reduction <add>, %240, %cst_74 [1] : vector<22x22xf32> to vector<22xf32>
    %242 = vector.shape_cast %241 : vector<22xf32> to vector<22x1xf32>
    %243 = vector.broadcast %242 : vector<22x1xf32> to vector<22x22xf32>
    %244 = arith.divf %240, %243 : vector<22x22xf32>
    %245 = vector.extract_strided_slice %216 {offsets = [0, 8], sizes = [22, 8], strides = [1, 1]} : vector<22x32xf32> to vector<22x8xf32>
    %cst_75 = arith.constant dense<0.000000e+00> : vector<22x8xf32>
    %246 = tpu.matmul %244, %245, %cst_75 {dimension_numbers = #tpu.dot_dimension_numbers<[1], [0], [0], [1], [0, 0, 1, 1], [], []>} : vector<22x22xf32>, vector<22x8xf32>, vector<22x8xf32> -> vector<22x8xf32>
    %247 = vector.extract_strided_slice %214 {offsets = [0, 16], sizes = [22, 8], strides = [1, 1]} : vector<22x32xf32> to vector<22x8xf32>
    %248 = vector.extract_strided_slice %215 {offsets = [0, 16], sizes = [22, 8], strides = [1, 1]} : vector<22x32xf32> to vector<22x8xf32>
    "tpu.trace_start"() <{level = 10 : i32, message = "td,sd->ts"}> : () -> ()
    %cst_76 = arith.constant dense<0.000000e+00> : vector<22x22xf32>
    %249 = tpu.matmul %247, %248, %cst_76 {dimension_numbers = #tpu.dot_dimension_numbers<[1], [1], [0], [0], [0, 0, 1, 0], [], []>} : vector<22x8xf32>, vector<22x8xf32>, vector<22x22xf32> -> vector<22x22xf32>
    "tpu.trace_stop"() : () -> ()
    %250 = arith.addf %249, %56 : vector<22x22xf32>
    %cst_77 = arith.constant dense<0xFF800000> : vector<22xf32>
    %251 = vector.multi_reduction <maximumf>, %250, %cst_77 [1] : vector<22x22xf32> to vector<22xf32>
    %252 = vector.shape_cast %251 : vector<22xf32> to vector<22x1xf32>
    %253 = vector.broadcast %252 : vector<22x1xf32> to vector<22x22xf32>
    %254 = arith.subf %250, %253 : vector<22x22xf32>
    %255 = math.exp %254 : vector<22x22xf32>
    %cst_78 = arith.constant dense<0.000000e+00> : vector<22xf32>
    %256 = vector.multi_reduction <add>, %255, %cst_78 [1] : vector<22x22xf32> to vector<22xf32>
    %257 = vector.shape_cast %256 : vector<22xf32> to vector<22x1xf32>
    %258 = vector.broadcast %257 : vector<22x1xf32> to vector<22x22xf32>
    %259 = arith.divf %255, %258 : vector<22x22xf32>
    %260 = vector.extract_strided_slice %216 {offsets = [0, 16], sizes = [22, 8], strides = [1, 1]} : vector<22x32xf32> to vector<22x8xf32>
    %cst_79 = arith.constant dense<0.000000e+00> : vector<22x8xf32>
    %261 = tpu.matmul %259, %260, %cst_79 {dimension_numbers = #tpu.dot_dimension_numbers<[1], [0], [0], [1], [0, 0, 1, 1], [], []>} : vector<22x22xf32>, vector<22x8xf32>, vector<22x8xf32> -> vector<22x8xf32>
    %262 = vector.extract_strided_slice %214 {offsets = [0, 24], sizes = [22, 8], strides = [1, 1]} : vector<22x32xf32> to vector<22x8xf32>
    %263 = vector.extract_strided_slice %215 {offsets = [0, 24], sizes = [22, 8], strides = [1, 1]} : vector<22x32xf32> to vector<22x8xf32>
    "tpu.trace_start"() <{level = 10 : i32, message = "td,sd->ts"}> : () -> ()
    %cst_80 = arith.constant dense<0.000000e+00> : vector<22x22xf32>
    %264 = tpu.matmul %262, %263, %cst_80 {dimension_numbers = #tpu.dot_dimension_numbers<[1], [1], [0], [0], [0, 0, 1, 0], [], []>} : vector<22x8xf32>, vector<22x8xf32>, vector<22x22xf32> -> vector<22x22xf32>
    "tpu.trace_stop"() : () -> ()
    %265 = arith.addf %264, %56 : vector<22x22xf32>
    %cst_81 = arith.constant dense<0xFF800000> : vector<22xf32>
    %266 = vector.multi_reduction <maximumf>, %265, %cst_81 [1] : vector<22x22xf32> to vector<22xf32>
    %267 = vector.shape_cast %266 : vector<22xf32> to vector<22x1xf32>
    %268 = vector.broadcast %267 : vector<22x1xf32> to vector<22x22xf32>
    %269 = arith.subf %265, %268 : vector<22x22xf32>
    %270 = math.exp %269 : vector<22x22xf32>
    %cst_82 = arith.constant dense<0.000000e+00> : vector<22xf32>
    %271 = vector.multi_reduction <add>, %270, %cst_82 [1] : vector<22x22xf32> to vector<22xf32>
    %272 = vector.shape_cast %271 : vector<22xf32> to vector<22x1xf32>
    %273 = vector.broadcast %272 : vector<22x1xf32> to vector<22x22xf32>
    %274 = arith.divf %270, %273 : vector<22x22xf32>
    %275 = vector.extract_strided_slice %216 {offsets = [0, 24], sizes = [22, 8], strides = [1, 1]} : vector<22x32xf32> to vector<22x8xf32>
    %cst_83 = arith.constant dense<0.000000e+00> : vector<22x8xf32>
    %276 = tpu.matmul %274, %275, %cst_83 {dimension_numbers = #tpu.dot_dimension_numbers<[1], [0], [0], [1], [0, 0, 1, 1], [], []>} : vector<22x22xf32>, vector<22x8xf32>, vector<22x8xf32> -> vector<22x8xf32>
    %277 = tpu.concatenate %231, %246, %261, %276 in 1 : vector<22x8xf32>, vector<22x8xf32>, vector<22x8xf32>, vector<22x8xf32> -> vector<22x32xf32>
    %c1_84 = arith.constant 1 : index
    %c0_85 = arith.constant 0 : index
    %c0_86 = arith.constant 0 : index
    %278 = vector.load %arg3[%c1_84, %c0_85, %c0_86] : memref<2x32x32xf32, #tpu.memory_space<vmem>>, vector<1x32x32xf32>
    %279 = vector.shape_cast %278 : vector<1x32x32xf32> to vector<32x32xf32>
    %cst_87 = arith.constant dense<0.000000e+00> : vector<22x32xf32>
    %280 = tpu.matmul %277, %279, %cst_87 {dimension_numbers = #tpu.dot_dimension_numbers<[1], [0], [0], [1], [0, 0, 1, 1], [], []>} : vector<22x32xf32>, vector<32x32xf32>, vector<22x32xf32> -> vector<22x32xf32>
    %281 = vector.broadcast %202 : vector<1x32xf32> to vector<22x32xf32>
    %282 = arith.addf %280, %281 : vector<22x32xf32>
    %283 = arith.addf %198, %282 : vector<22x32xf32>
    %cst_88 = arith.constant dense<0.000000e+00> : vector<22xf32>
    %284 = vector.multi_reduction <add>, %283, %cst_88 [1] : vector<22x32xf32> to vector<22xf32>
    %285 = vector.shape_cast %284 : vector<22xf32> to vector<22x1xf32>
    %cst_89 = arith.constant 3.200000e+01 : f32
    %286 = vector.broadcast %cst_89 : f32 to vector<22x1xf32>
    %287 = arith.divf %285, %286 : vector<22x1xf32>
    %288 = vector.broadcast %287 : vector<22x1xf32> to vector<22x32xf32>
    %289 = arith.subf %283, %288 : vector<22x32xf32>
    %290 = arith.mulf %289, %289 : vector<22x32xf32>
    %cst_90 = arith.constant dense<0.000000e+00> : vector<22xf32>
    %291 = vector.multi_reduction <add>, %290, %cst_90 [1] : vector<22x32xf32> to vector<22xf32>
    %292 = vector.shape_cast %291 : vector<22xf32> to vector<22x1xf32>
    %cst_91 = arith.constant 3.200000e+01 : f32
    %293 = vector.broadcast %cst_91 : f32 to vector<22x1xf32>
    %294 = arith.divf %292, %293 : vector<22x1xf32>
    %295 = vector.broadcast %287 : vector<22x1xf32> to vector<22x32xf32>
    %296 = arith.subf %283, %295 : vector<22x32xf32>
    %cst_92 = arith.constant 9.99999974E-6 : f32
    %297 = vector.broadcast %cst_92 : f32 to vector<22x1xf32>
    %298 = arith.addf %294, %297 : vector<22x1xf32>
    %299 = math.rsqrt %298 : vector<22x1xf32>
    %300 = vector.broadcast %299 : vector<22x1xf32> to vector<22x32xf32>
    %301 = arith.mulf %296, %300 : vector<22x32xf32>
    %302 = vector.broadcast %205 : vector<1x32xf32> to vector<22x32xf32>
    %303 = arith.mulf %301, %302 : vector<22x32xf32>
    %304 = vector.broadcast %206 : vector<1x32xf32> to vector<22x32xf32>
    %305 = arith.addf %303, %304 : vector<22x32xf32>
    %c1_93 = arith.constant 1 : index
    %c0_94 = arith.constant 0 : index
    %c0_95 = arith.constant 0 : index
    %306 = vector.load %arg4[%c1_93, %c0_94, %c0_95] : memref<2x32x128xf32, #tpu.memory_space<vmem>>, vector<1x32x128xf32>
    %307 = vector.shape_cast %306 : vector<1x32x128xf32> to vector<32x128xf32>
    %cst_96 = arith.constant dense<0.000000e+00> : vector<22x128xf32>
    %308 = tpu.matmul %305, %307, %cst_96 {dimension_numbers = #tpu.dot_dimension_numbers<[1], [0], [0], [1], [0, 0, 1, 1], [], []>} : vector<22x32xf32>, vector<32x128xf32>, vector<22x128xf32> -> vector<22x128xf32>
    %309 = vector.broadcast %203 : vector<1x128xf32> to vector<22x128xf32>
    %310 = arith.addf %308, %309 : vector<22x128xf32>
    %cst_97 = arith.constant 0.000000e+00 : f32
    %311 = vector.broadcast %cst_97 : f32 to vector<22x128xf32>
    %312 = arith.maximumf %310, %311 : vector<22x128xf32>
    %c1_98 = arith.constant 1 : index
    %c0_99 = arith.constant 0 : index
    %c0_100 = arith.constant 0 : index
    %313 = vector.load %arg5[%c1_98, %c0_99, %c0_100] : memref<2x128x32xf32, #tpu.memory_space<vmem>>, vector<1x128x32xf32>
    %314 = vector.shape_cast %313 : vector<1x128x32xf32> to vector<128x32xf32>
    %cst_101 = arith.constant dense<0.000000e+00> : vector<22x32xf32>
    %315 = tpu.matmul %312, %314, %cst_101 {dimension_numbers = #tpu.dot_dimension_numbers<[1], [0], [0], [1], [0, 0, 1, 1], [], []>} : vector<22x128xf32>, vector<128x32xf32>, vector<22x32xf32> -> vector<22x32xf32>
    %316 = vector.broadcast %204 : vector<1x32xf32> to vector<22x32xf32>
    %317 = arith.addf %315, %316 : vector<22x32xf32>
    %318 = arith.addf %305, %317 : vector<22x32xf32>
    %cst_102 = arith.constant dense<0.000000e+00> : vector<22xf32>
    %319 = vector.multi_reduction <add>, %318, %cst_102 [1] : vector<22x32xf32> to vector<22xf32>
    %320 = vector.shape_cast %319 : vector<22xf32> to vector<22x1xf32>
    %cst_103 = arith.constant 3.200000e+01 : f32
    %321 = vector.broadcast %cst_103 : f32 to vector<22x1xf32>
    %322 = arith.divf %320, %321 : vector<22x1xf32>
    %323 = vector.broadcast %322 : vector<22x1xf32> to vector<22x32xf32>
    %324 = arith.subf %318, %323 : vector<22x32xf32>
    %325 = arith.mulf %324, %324 : vector<22x32xf32>
    %cst_104 = arith.constant dense<0.000000e+00> : vector<22xf32>
    %326 = vector.multi_reduction <add>, %325, %cst_104 [1] : vector<22x32xf32> to vector<22xf32>
    %327 = vector.shape_cast %326 : vector<22xf32> to vector<22x1xf32>
    %cst_105 = arith.constant 3.200000e+01 : f32
    %328 = vector.broadcast %cst_105 : f32 to vector<22x1xf32>
    %329 = arith.divf %327, %328 : vector<22x1xf32>
    %330 = vector.broadcast %322 : vector<22x1xf32> to vector<22x32xf32>
    %331 = arith.subf %318, %330 : vector<22x32xf32>
    %cst_106 = arith.constant 9.99999974E-6 : f32
    %332 = vector.broadcast %cst_106 : f32 to vector<22x1xf32>
    %333 = arith.addf %329, %332 : vector<22x1xf32>
    %334 = math.rsqrt %333 : vector<22x1xf32>
    %335 = vector.broadcast %334 : vector<22x1xf32> to vector<22x32xf32>
    %336 = arith.mulf %331, %335 : vector<22x32xf32>
    %337 = vector.broadcast %207 : vector<1x32xf32> to vector<22x32xf32>
    %338 = arith.mulf %336, %337 : vector<22x32xf32>
    %339 = vector.broadcast %208 : vector<1x32xf32> to vector<22x32xf32>
    %340 = arith.addf %338, %339 : vector<22x32xf32>
    %c0_107 = arith.constant 0 : index
    %c0_108 = arith.constant 0 : index
    %341 = vector.load %arg7[%c0_107, %c0_108] : memref<22x32xf32, #tpu.memory_space<vmem>>, vector<22x32xf32>
    tpu.vector_store %arg7[%c0_107, %c0_108], %340 {strides = array<i32>} : memref<22x32xf32, #tpu.memory_space<vmem>>, vector<22x32xf32>,
    return
  }
}

</mosaic_0001>

<llo_original>
// kernel: tile.19
$region0: #{tile.19}
  %s0 = inlined_call_operand.vmem [shape: f32[2,3,32], index: 0, kind: input, shape index: {}]
  %s1 = inlined_call_operand.vmem [shape: f32[6,32], index: 1, kind: output, shape index: {}]
  $region1: #{tile.19} parent=0
    #allocation0 [shape = 'u8[8192]{0}', space=vmem, size = 0x2000, scoped, tag = 'scoped mem for input reshape']
    %s3 = ssub.s32 16, 1
    %s4 = scalar_lea.vmem %s0, 4
    %v5 = vld [vmem:[%s4] sm:%s3]
    %s6 = scalar_lea.vmem [#allocation0], 8
    %7 = vst [vmem:[%s6] sm:%s3] %v5
    %v8 = vld [vmem:[%s0] sm:%s3]
    %9 = vst [vmem:[#allocation0] sm:%s3] %v8
    %v10 = vld [vmem:[#allocation0] sm:$0x7]
    %vm11 = vcmask 261120
    %12 = vst.msk [vmem:[%s1] sm:$0x7] %vm11, %v10
    %s13 = scalar_lea.vmem [#allocation0], 8
    %v14 = vld [vmem:[%s13] sm:$0x7]
    %vm15 = vcmask 261120
    %s16 = scalar_lea.vmem %s1, 3
    %17 = vst.msk [vmem:[%s16] sm:$0x7] %vm15, %v14

// kernel: append_encoder_forward.1
$region0: #{append_encoder_forward.1}
  #allocation0 [shape = 'u32[]', space=smem, size = 0x4, offset = 0x4, fixed_abs, tag = 'smem constant byte address 0x4 - core index']
  #allocation1 [shape = 'u32[72,128]{1,0:T(1,128)}', space=vmem, size = 0x9000, scoped, tag = 'internal scratch']
  %s0 = inlined_call_operand.vmem [shape: f32[16,32], index: 0, kind: input, shape index: {}]
  %s1 = inlined_call_operand.vmem [shape: f32[22,32], index: 1, kind: input, shape index: {}]
  %s2 = inlined_call_operand.vmem [shape: f32[2,32,96], index: 2, kind: input, shape index: {}]
  %s3 = inlined_call_operand.vmem [shape: f32[2,32,32], index: 3, kind: input, shape index: {}]
  %s4 = inlined_call_operand.vmem [shape: f32[2,32,128], index: 4, kind: input, shape index: {}]
  %s5 = inlined_call_operand.vmem [shape: f32[2,128,32], index: 5, kind: input, shape index: {}]
  %s6 = inlined_call_operand.vmem [shape: f32[2,8,128], index: 6, kind: input, shape index: {}]
  %s7 = inlined_call_operand.vmem [shape: f32[22,32], index: 7, kind: output, shape index: {}]
  %s8 = sld [smem:[#allocation0]]
  $region38: #{append_encoder_forward.1} parent=0
    _
  %s10 = ssub.s32 1, %s8
  %s11 = scalar_select 0, %s10, %s8
  // Predicated region
  $region2: #{append_encoder_forward.1} parent=0 // pred_check
    _
  $region3: #{append_encoder_forward.1} parent=0 // pred_check_branch
    %13 = sbr.rel (0) target = $region5
  $region4: #{append_encoder_forward.1} parent=0 // pred_region
    _
  $region5: #{append_encoder_forward.1} parent=0 // pred_fallthru
    _
  // Predicated region
  $region6: #{append_encoder_forward.1} parent=0 // pred_check
    _
  $region7: #{append_encoder_forward.1} parent=0 // pred_check_branch
    %15 = sbr.rel (0) target = $region9
  $region8: #{append_encoder_forward.1} parent=0 // pred_region
    _
  $region9: #{append_encoder_forward.1} parent=0 // pred_fallthru
    _
  // Predicated region
  $region10: #{append_encoder_forward.1} parent=0 // pred_check
    _
  $region11: #{append_encoder_forward.1} parent=0 // pred_check_branch
    %17 = sbr.rel (0) target = $region13
  $region12: #{append_encoder_forward.1} parent=0 // pred_region
    _
  $region13: #{append_encoder_forward.1} parent=0 // pred_fallthru
    _
  // Predicated region
  $region14: #{append_encoder_forward.1} parent=0 // pred_check
    _
  $region15: #{append_encoder_forward.1} parent=0 // pred_check_branch
    %19 = sbr.rel (0) target = $region17
  $region16: #{append_encoder_forward.1} parent=0 // pred_region
    _
  $region17: #{append_encoder_forward.1} parent=0 // pred_fallthru
    _
  // Predicated region
  $region18: #{append_encoder_forward.1} parent=0 // pred_check
    _
  $region19: #{append_encoder_forward.1} parent=0 // pred_check_branch
    %21 = sbr.rel (0) target = $region21
  $region20: #{append_encoder_forward.1} parent=0 // pred_region
    _
  $region21: #{append_encoder_forward.1} parent=0 // pred_fallthru
    _
  // Predicated region
  $region22: #{append_encoder_forward.1} parent=0 // pred_check
    _
  $region23: #{append_encoder_forward.1} parent=0 // pred_check_branch
    %23 = sbr.rel (0) target = $region25
  $region24: #{append_encoder_forward.1} parent=0 // pred_region
    _
  $region25: #{append_encoder_forward.1} parent=0 // pred_fallthru
    _
  // Predicated region
  $region26: #{append_encoder_forward.1} parent=0 // pred_check
    _
  $region27: #{append_encoder_forward.1} parent=0 // pred_check_branch
    %25 = sbr.rel (0) target = $region29
  $region28: #{append_encoder_forward.1} parent=0 // pred_region
    _
  $region29: #{append_encoder_forward.1} parent=0 // pred_fallthru
    _
  %v26 = vld [vmem:[%s0] sm:$0xff]
  %v27 = vld [vmem:[%s0 + $0x8] sm:$0xff]
  %v28 = vld [vmem:[%s1] sm:$0xff]
  %v29 = vld [vmem:[%s1 + $0x8] sm:$0xff]
  %v30 = vadd.f32 %v26, %v28
  %v31 = vadd.f32 %v27, %v29
  %v32 = vld [vmem:[%s1 + $0x10] sm:$0x3f]
  %v33 = vlaneseq
  %v34 = vshrl.u32 %v33, 7
  %v35 = vadd.s32 %v34, 8
  %v36 = vadd.s32 %v34, 16
  %v37 = vlaneseq
  %v38 = vand.u32 %v37, 127
  %vm39 = vcmp.ge.s32.totalorder %v34, 0
  %vm40 = vcmp.ge.s32.totalorder %v35, 0
  %vm41 = vcmp.ge.s32.totalorder %v36, 0
  %vm42 = vcmp.lt.s32.totalorder %v34, 8
  %vm43 = vcmp.lt.s32.totalorder %v35, 8
  %vm44 = vcmp.lt.s32.totalorder %v36, 8
  %vm45 = vmand %vm39, %vm42
  %vm46 = vmand %vm40, %vm43
  %vm47 = vmand %vm41, %vm44
  %vm48 = vcmp.ge.s32.totalorder %v34, 16
  %vm49 = vcmp.ge.s32.totalorder %v35, 16
  %vm50 = vcmp.ge.s32.totalorder %v36, 16
  %vm51 = vcmp.lt.s32.totalorder %v34, 19
  %vm52 = vcmp.lt.s32.totalorder %v35, 19
  %vm53 = vcmp.lt.s32.totalorder %v36, 19
  %vm54 = vmand %vm48, %vm51
  %vm55 = vmand %vm49, %vm52
  %vm56 = vmand %vm50, %vm53
  %vm57 = vmor %vm45, %vm54
  %vm58 = vmor %vm46, %vm55
  %vm59 = vmor %vm47, %vm56
  %vm60 = vcmp.ge.s32.totalorder %v38, 0
  %vm61 = vcmp.lt.s32.totalorder %v38, 8
  %vm62 = vmand %vm60, %vm61
  %vm63 = vcmp.ge.s32.totalorder %v38, 16
  %vm64 = vcmp.lt.s32.totalorder %v38, 19
  %vm65 = vmand %vm63, %vm64
  %vm66 = vmor %vm62, %vm65
  %vm67 = vmand %vm57, %vm66
  %vm68 = vmand %vm58, %vm66
  %vm69 = vmand %vm59, %vm66
  %vm70 = vcmp.ge.s32.totalorder %v34, 8
  %vm71 = vcmp.ge.s32.totalorder %v35, 8
  %vm72 = vcmp.ge.s32.totalorder %v36, 8
  %vm73 = vcmp.lt.s32.totalorder %v34, 16
  %vm74 = vcmp.lt.s32.totalorder %v35, 16
  %vm75 = vcmp.lt.s32.totalorder %v36, 16
  %vm76 = vmand %vm70, %vm73
  %vm77 = vmand %vm71, %vm74
  %vm78 = vmand %vm72, %vm75
  %vm79 = vcmp.ge.s32.totalorder %v34, 19
  %vm80 = vcmp.ge.s32.totalorder %v35, 19
  %vm81 = vcmp.ge.s32.totalorder %v36, 19
  %vm82 = vcmp.lt.s32.totalorder %v34, 22
  %vm83 = vcmp.lt.s32.totalorder %v35, 22
  %vm84 = vcmp.lt.s32.totalorder %v36, 22
  %vm85 = vmand %vm79, %vm82
  %vm86 = vmand %vm80, %vm83
  %vm87 = vmand %vm81, %vm84
  %vm88 = vmor %vm76, %vm85
  %vm89 = vmor %vm77, %vm86
  %vm90 = vmor %vm78, %vm87
  %vm91 = vcmp.ge.s32.totalorder %v38, 8
  %vm92 = vcmp.lt.s32.totalorder %v38, 16
  %vm93 = vmand %vm91, %vm92
  %vm94 = vcmp.ge.s32.totalorder %v38, 19
  %vm95 = vcmp.lt.s32.totalorder %v38, 22
  %vm96 = vmand %vm94, %vm95
  %vm97 = vmor %vm93, %vm96
  %vm98 = vmand %vm88, %vm97
  %vm99 = vmand %vm89, %vm97
  %vm100 = vmand %vm90, %vm97
  %vm101 = vmor %vm67, %vm98
  %vm102 = vmor %vm68, %vm99
  %vm103 = vmor %vm69, %vm100
  %v104 = vsel %vm101, 0.0, -1e+09
  %v105 = vsel %vm102, 0.0, -1e+09
  %v106 = vsel %vm103, 0.0, -1e+09
  %v107 = vld [vmem:[%s6] sm:$0xff]
  %v108 = vld [vmem:[%s2] sm:$0xff]
  %v109 = vld [vmem:[%s2 + $0x8] sm:$0xff]
  %v110 = vld [vmem:[%s2 + $0x10] sm:$0xff]
  %v111 = vld [vmem:[%s2 + $0x18] sm:$0xff]
  %v112 = vperm.slane %v107, 0
  %vm113 = vcmask 261120
  %v115 = vsel %vm113, %v30, 0
  %v118 = vsel %vm113, %v31, 0
  %v121 = vsel %vm113, %v32, 0
  %123 = vmatpush.msra.mxu0 0.0
  %124 = vmatpush.msra.mxu0 0.0
  %125 = vmatpush.msra.mxu0 0.0
  %126 = vmatpush.msra.mxu0 0.0
  %127 = vmatpush.msra.mxu0 0.0
  %128 = vmatpush.msra.mxu0 0.0
  %129 = vmatpush.msra.mxu0 0.0
  %130 = vmatpush.msra.mxu0 0.0
  %131 = vmatpush.msra.mxu0 0.0
  %132 = vmatpush.msra.mxu0 0.0
  %133 = vmatpush.msra.mxu0 0.0
  %134 = vmatpush.msra.mxu0 0.0
  %135 = vmatpush.msra.mxu0 %v111
  %136 = vmatpush.msra.mxu0 %v110
  %137 = vmatpush.msra.mxu0 %v109
  %138 = vmatpush.msra.mxu0 %v108
  %139 = vmatmul.f32.gmra.mxu0 %v115
  %v140 = vpop.f32.mrf.mxu0
  %v141 = vadd.f32 %v112, %v140
  %142 = vmatmul.f32.gmra.mxu0 %v118
  %v143 = vpop.f32.mrf.mxu0
  %v144 = vadd.f32 %v112, %v143
  %145 = vmatmul.f32.gmra.mxu0 %v121
  %v146 = vpop.f32.mrf.mxu0
  %v147 = vadd.f32 %v112, %v146
  %148 = vdwg.mxu0
  %152 = vrot.lane.b32.xlu0 %v141, 96
  %v153 = vpop.permute.xlu0 %152
  %154 = vrot.lane.b32.xlu0 %v144, 96
  %v155 = vpop.permute.xlu0 %154
  %156 = vrot.lane.b32.xlu0 %v147, 96
  %v157 = vpop.permute.xlu0 %156
  %vm158 = vcmask 64512
  %v159 = vsel %vm158, %v141, 0
  %v161 = vsel %vm158, %v144, 0
  %v163 = vsel %vm158, %v147, 0
  %v165 = vsel %vm158, %v153, 0
  %v167 = vsel %vm158, %v155, 0
  %v169 = vsel %vm158, %v157, 0
  %171 = vmatpush.xpose.msra.mxu0 0.0
  %172 = vmatpush.xpose.msra.mxu0 0.0
  %173 = vmatpush.xpose.msra.mxu0 0.0
  %174 = vmatpush.xpose.msra.mxu0 0.0
  %175 = vmatpush.xpose.msra.mxu0 0.0
  %176 = vmatpush.xpose.msra.mxu0 0.0
  %177 = vmatpush.xpose.msra.mxu0 0.0
  %178 = vmatpush.xpose.msra.mxu0 0.0
  %179 = vmatpush.xpose.msra.mxu0 0.0
  %180 = vmatpush.xpose.msra.mxu0 0.0
  %181 = vmatpush.xpose.msra.mxu0 0.0
  %182 = vmatpush.xpose.msra.mxu0 0.0
  %183 = vmatpush.xpose.msra.mxu0 0.0
  %184 = vmatpush.xpose.msra.mxu0 %v169
  %185 = vmatpush.xpose.msra.mxu0 %v167
  %186 = vmatpush.xpose.msra.mxu0 %v165
  %187 = vmatmul.f32.gmra.mxu0 %v159
  %v188 = vpop.f32.mrf.mxu0
  %v189 = vadd.f32 %v104, %v188
  %190 = vmatmul.f32.gmra.mxu0 %v161
  %v191 = vpop.f32.mrf.mxu0
  %v192 = vadd.f32 %v105, %v191
  %193 = vmatmul.f32.gmra.mxu0 %v163
  %v194 = vpop.f32.mrf.mxu0
  %v195 = vadd.f32 %v106, %v194
  %196 = vdwg.mxu0
  %vm197 = vcmask 179200
  %v198 = vsel %vm197, %v189, -inf
  %199 = vmax.xlane.f32.xlu0 %v198
  %v200 = vpop.xlane.xlu0 %199
  %v201 = vsel %vm197, %v192, -inf
  %202 = vmax.xlane.f32.xlu0 %v201
  %v203 = vpop.xlane.xlu0 %202
  %vm204 = vcmask 177152
  %v205 = vsel %vm204, %v195, -inf
  %206 = vmax.xlane.f32.xlu0 %v205
  %v207 = vpop.xlane.xlu0 %206
  %v208 = vsub.f32 %v189, %v200
  %v209 = vsub.f32 %v192, %v203
  %v210 = vsub.f32 %v195, %v207
  %v211 = vmul.f32 %v208, 1.442695
  %v212 = vpow.pop %v211
  %v213 = vmul.f32 %v209, 1.442695
  %v214 = vpow.pop %v213
  %v215 = vmul.f32 %v210, 1.442695
  %v216 = vpow.pop %v215
  %v217 = vsel %vm197, %v212, 0.0
  %218 = vadd.xlane.f32.xlu0 %v217
  %v219 = vpop.xlane.xlu0 %218
  %v220 = vsel %vm197, %v214, 0.0
  %221 = vadd.xlane.f32.xlu0 %v220
  %v222 = vpop.xlane.xlu0 %221
  %v223 = vsel %vm204, %v216, 0.0
  %224 = vadd.xlane.f32.xlu0 %v223
  %v225 = vpop.xlane.xlu0 %224
  %v226 = vrcp.pop %v219
  %v227 = vmul.f32 %v219, %v226
  %v228 = vsub.f32 1.0, %v227
  %v229 = vmul.f32 %v226, %v228
  %v230 = vadd.f32 %v226, %v229
  %vm231 = vweird.f32 %v219
  %vm232 = vweird.f32 %v226
  %vm233 = vmor %vm231, %vm232
  %v234 = vsel %vm233, %v226, %v230
  %v235 = vand.u32 2147483647, %v219
  %vm236 = vcmp.eq.f32.partialorder %v235, 8.507059e+37
  %v237 = vand.u32 %v219, 2147483648
  %v238 = vor.u32 1.1754944e-38, %v237
  %v239 = vsel %vm236, %v238, %v234
  %v240 = vmul.f32 %v212, %v239
  %v241 = vrcp.pop %v222
  %v242 = vmul.f32 %v222, %v241
  %v243 = vsub.f32 1.0, %v242
  %v244 = vmul.f32 %v241, %v243
  %v245 = vadd.f32 %v241, %v244
  %vm246 = vweird.f32 %v222
  %vm247 = vweird.f32 %v241
  %vm248 = vmor %vm246, %vm247
  %v249 = vsel %vm248, %v241, %v245
  %v250 = vand.u32 2147483647, %v222
  %vm251 = vcmp.eq.f32.partialorder %v250, 8.507059e+37
  %v252 = vand.u32 %v222, 2147483648
  %v253 = vor.u32 1.1754944e-38, %v252
  %v254 = vsel %vm251, %v253, %v249
  %v255 = vmul.f32 %v214, %v254
  %v256 = vrcp.pop %v225
  %v257 = vmul.f32 %v225, %v256
  %v258 = vsub.f32 1.0, %v257
  %v259 = vmul.f32 %v256, %v258
  %v260 = vadd.f32 %v256, %v259
  %vm261 = vweird.f32 %v225
  %vm262 = vweird.f32 %v256
  %vm263 = vmor %vm261, %vm262
  %v264 = vsel %vm263, %v256, %v260
  %v265 = vand.u32 2147483647, %v225
  %vm266 = vcmp.eq.f32.partialorder %v265, 8.507059e+37
  %v267 = vand.u32 %v225, 2147483648
  %v268 = vor.u32 1.1754944e-38, %v267
  %v269 = vsel %vm266, %v268, %v264
  %v270 = vmul.f32 %v216, %v269
  %271 = vrot.lane.b32.xlu0 %v141, 64
  %v272 = vpop.permute.xlu0 %271
  %273 = vrot.lane.b32.xlu0 %v144, 64
  %v274 = vpop.permute.xlu0 %273
  %275 = vrot.lane.b32.xlu0 %v147, 64
  %v276 = vpop.permute.xlu0 %275
  %v280 = vsel %vm197, %v240, 0
  %v283 = vsel %vm197, %v255, 0
  %v286 = vsel %vm197, %v270, 0
  %vm288 = vcmask 1045504
  %v289 = vsel %vm288, %v276, 0
  %291 = vmatpush.msra.mxu0 0.0
  %292 = vmatpush.msra.mxu0 0.0
  %293 = vmatpush.msra.mxu0 0.0
  %294 = vmatpush.msra.mxu0 0.0
  %295 = vmatpush.msra.mxu0 0.0
  %296 = vmatpush.msra.mxu0 0.0
  %297 = vmatpush.msra.mxu0 0.0
  %298 = vmatpush.msra.mxu0 0.0
  %299 = vmatpush.msra.mxu0 0.0
  %300 = vmatpush.msra.mxu0 0.0
  %301 = vmatpush.msra.mxu0 0.0
  %302 = vmatpush.msra.mxu0 0.0
  %303 = vmatpush.msra.mxu0 0.0
  %304 = vmatpush.msra.mxu0 %v289
  %305 = vmatpush.msra.mxu0 %v274
  %306 = vmatpush.msra.mxu0 %v272
  %307 = vmatmul.f32.gmra.mxu0 %v280
  %v308 = vpop.f32.mrf.mxu0
  %v309 = vadd.f32 0.0, %v308
  %310 = vmatmul.f32.gmra.mxu0 %v283
  %v311 = vpop.f32.mrf.mxu0
  %v312 = vadd.f32 0.0, %v311
  %313 = vmatmul.f32.gmra.mxu0 %v286
  %v314 = vpop.f32.mrf.mxu0
  %v315 = vadd.f32 0.0, %v314
  %316 = vdwg.mxu0
  %317 = vrot.lane.b32.xlu0 %v141, 120
  %v318 = vpop.permute.xlu0 %317
  %319 = vrot.lane.b32.xlu0 %v144, 120
  %v320 = vpop.permute.xlu0 %319
  %321 = vrot.lane.b32.xlu0 %v147, 120
  %v322 = vpop.permute.xlu0 %321
  %323 = vrot.lane.b32.xlu0 %v141, 88
  %v324 = vpop.permute.xlu0 %323
  %325 = vrot.lane.b32.xlu0 %v144, 88
  %v326 = vpop.permute.xlu0 %325
  %327 = vrot.lane.b32.xlu0 %v147, 88
  %v328 = vpop.permute.xlu0 %327
  %v329 = vsel %vm158, %v318, 0
  %v331 = vsel %vm158, %v320, 0
  %v333 = vsel %vm158, %v322, 0
  %v335 = vsel %vm158, %v324, 0
  %v337 = vsel %vm158, %v326, 0
  %v339 = vsel %vm158, %v328, 0
  %341 = vmatpush.xpose.msra.mxu0 0.0
  %342 = vmatpush.xpose.msra.mxu0 0.0
  %343 = vmatpush.xpose.msra.mxu0 0.0
  %344 = vmatpush.xpose.msra.mxu0 0.0
  %345 = vmatpush.xpose.msra.mxu0 0.0
  %346 = vmatpush.xpose.msra.mxu0 0.0
  %347 = vmatpush.xpose.msra.mxu0 0.0
  %348 = vmatpush.xpose.msra.mxu0 0.0
  %349 = vmatpush.xpose.msra.mxu0 0.0
  %350 = vmatpush.xpose.msra.mxu0 0.0
  %351 = vmatpush.xpose.msra.mxu0 0.0
  %352 = vmatpush.xpose.msra.mxu0 0.0
  %353 = vmatpush.xpose.msra.mxu0 0.0
  %354 = vmatpush.xpose.msra.mxu0 %v339
  %355 = vmatpush.xpose.msra.mxu0 %v337
  %356 = vmatpush.xpose.msra.mxu0 %v335
  %357 = vmatmul.f32.gmra.mxu0 %v329
  %v358 = vpop.f32.mrf.mxu0
  %v359 = vadd.f32 %v104, %v358
  %360 = vmatmul.f32.gmra.mxu0 %v331
  %v361 = vpop.f32.mrf.mxu0
  %v362 = vadd.f32 %v105, %v361
  %363 = vmatmul.f32.gmra.mxu0 %v333
  %v364 = vpop.f32.mrf.mxu0
  %v365 = vadd.f32 %v106, %v364
  %366 = vdwg.mxu0
  %v367 = vsel %vm197, %v359, -inf
  %368 = vmax.xlane.f32.xlu0 %v367
  %v369 = vpop.xlane.xlu0 %368
  %v370 = vsel %vm197, %v362, -inf
  %371 = vmax.xlane.f32.xlu0 %v370
  %v372 = vpop.xlane.xlu0 %371
  %v373 = vsel %vm204, %v365, -inf
  %374 = vmax.xlane.f32.xlu0 %v373
  %v375 = vpop.xlane.xlu0 %374
  %v376 = vsub.f32 %v359, %v369
  %v377 = vsub.f32 %v362, %v372
  %v378 = vsub.f32 %v365, %v375
  %v379 = vmul.f32 %v376, 1.442695
  %v380 = vpow.pop %v379
  %v381 = vmul.f32 %v377, 1.442695
  %v382 = vpow.pop %v381
  %v383 = vmul.f32 %v378, 1.442695
  %v384 = vpow.pop %v383
  %v385 = vsel %vm197, %v380, 0.0
  %386 = vadd.xlane.f32.xlu0 %v385
  %v387 = vpop.xlane.xlu0 %386
  %v388 = vsel %vm197, %v382, 0.0
  %389 = vadd.xlane.f32.xlu0 %v388
  %v390 = vpop.xlane.xlu0 %389
  %v391 = vsel %vm204, %v384, 0.0
  %392 = vadd.xlane.f32.xlu0 %v391
  %v393 = vpop.xlane.xlu0 %392
  %v394 = vrcp.pop %v387
  %v395 = vmul.f32 %v387, %v394
  %v396 = vsub.f32 1.0, %v395
  %v397 = vmul.f32 %v394, %v396
  %v398 = vadd.f32 %v394, %v397
  %vm399 = vweird.f32 %v387
  %vm400 = vweird.f32 %v394
  %vm401 = vmor %vm399, %vm400
  %v402 = vsel %vm401, %v394, %v398
  %v403 = vand.u32 2147483647, %v387
  %vm404 = vcmp.eq.f32.partialorder %v403, 8.507059e+37
  %v405 = vand.u32 %v387, 2147483648
  %v406 = vor.u32 1.1754944e-38, %v405
  %v407 = vsel %vm404, %v406, %v402
  %v408 = vmul.f32 %v380, %v407
  %v409 = vrcp.pop %v390
  %v410 = vmul.f32 %v390, %v409
  %v411 = vsub.f32 1.0, %v410
  %v412 = vmul.f32 %v409, %v411
  %v413 = vadd.f32 %v409, %v412
  %vm414 = vweird.f32 %v390
  %vm415 = vweird.f32 %v409
  %vm416 = vmor %vm414, %vm415
  %v417 = vsel %vm416, %v409, %v413
  %v418 = vand.u32 2147483647, %v390
  %vm419 = vcmp.eq.f32.partialorder %v418, 8.507059e+37
  %v420 = vand.u32 %v390, 2147483648
  %v421 = vor.u32 1.1754944e-38, %v420
  %v422 = vsel %vm419, %v421, %v417
  %v423 = vmul.f32 %v382, %v422
  %v424 = vrcp.pop %v393
  %v425 = vmul.f32 %v393, %v424
  %v426 = vsub.f32 1.0, %v425
  %v427 = vmul.f32 %v424, %v426
  %v428 = vadd.f32 %v424, %v427
  %vm429 = vweird.f32 %v393
  %vm430 = vweird.f32 %v424
  %vm431 = vmor %vm429, %vm430
  %v432 = vsel %vm431, %v424, %v428
  %v433 = vand.u32 2147483647, %v393
  %vm434 = vcmp.eq.f32.partialorder %v433, 8.507059e+37
  %v435 = vand.u32 %v393, 2147483648
  %v436 = vor.u32 1.1754944e-38, %v435
  %v437 = vsel %vm434, %v436, %v432
  %v438 = vmul.f32 %v384, %v437
  %439 = vrot.lane.b32.xlu0 %v141, 56
  %v440 = vpop.permute.xlu0 %439
  %441 = vrot.lane.b32.xlu0 %v144, 56
  %v442 = vpop.permute.xlu0 %441
  %443 = vrot.lane.b32.xlu0 %v147, 56
  %v444 = vpop.permute.xlu0 %443
  %v448 = vsel %vm197, %v408, 0
  %v451 = vsel %vm197, %v423, 0
  %v454 = vsel %vm197, %v438, 0
  %v456 = vsel %vm288, %v444, 0
  %458 = vmatpush.msra.mxu0 0.0
  %459 = vmatpush.msra.mxu0 0.0
  %460 = vmatpush.msra.mxu0 0.0
  %461 = vmatpush.msra.mxu0 0.0
  %462 = vmatpush.msra.mxu0 0.0
  %463 = vmatpush.msra.mxu0 0.0
  %464 = vmatpush.msra.mxu0 0.0
  %465 = vmatpush.msra.mxu0 0.0
  %466 = vmatpush.msra.mxu0 0.0
  %467 = vmatpush.msra.mxu0 0.0
  %468 = vmatpush.msra.mxu0 0.0
  %469 = vmatpush.msra.mxu0 0.0
  %470 = vmatpush.msra.mxu0 0.0
  %471 = vmatpush.msra.mxu0 %v456
  %472 = vmatpush.msra.mxu0 %v442
  %473 = vmatpush.msra.mxu0 %v440
  %474 = vmatmul.f32.gmra.mxu0 %v448
  %v475 = vpop.f32.mrf.mxu0
  %v476 = vadd.f32 0.0, %v475
  %477 = vmatmul.f32.gmra.mxu0 %v451
  %v478 = vpop.f32.mrf.mxu0
  %v479 = vadd.f32 0.0, %v478
  %480 = vmatmul.f32.gmra.mxu0 %v454
  %v481 = vpop.f32.mrf.mxu0
  %v482 = vadd.f32 0.0, %v481
  %483 = vdwg.mxu0
  %484 = vrot.lane.b32.xlu0 %v141, 112
  %v485 = vpop.permute.xlu0 %484
  %486 = vrot.lane.b32.xlu0 %v144, 112
  %v487 = vpop.permute.xlu0 %486
  %488 = vrot.lane.b32.xlu0 %v147, 112
  %v489 = vpop.permute.xlu0 %488
  %490 = vrot.lane.b32.xlu0 %v141, 80
  %v491 = vpop.permute.xlu0 %490
  %492 = vrot.lane.b32.xlu0 %v144, 80
  %v493 = vpop.permute.xlu0 %492
  %494 = vrot.lane.b32.xlu0 %v147, 80
  %v495 = vpop.permute.xlu0 %494
  %v496 = vsel %vm158, %v485, 0
  %v498 = vsel %vm158, %v487, 0
  %v500 = vsel %vm158, %v489, 0
  %v502 = vsel %vm158, %v491, 0
  %v504 = vsel %vm158, %v493, 0
  %v506 = vsel %vm158, %v495, 0
  %508 = vmatpush.xpose.msra.mxu0 0.0
  %509 = vmatpush.xpose.msra.mxu0 0.0
  %510 = vmatpush.xpose.msra.mxu0 0.0
  %511 = vmatpush.xpose.msra.mxu0 0.0
  %512 = vmatpush.xpose.msra.mxu0 0.0
  %513 = vmatpush.xpose.msra.mxu0 0.0
  %514 = vmatpush.xpose.msra.mxu0 0.0
  %515 = vmatpush.xpose.msra.mxu0 0.0
  %516 = vmatpush.xpose.msra.mxu0 0.0
  %517 = vmatpush.xpose.msra.mxu0 0.0
  %518 = vmatpush.xpose.msra.mxu0 0.0
  %519 = vmatpush.xpose.msra.mxu0 0.0
  %520 = vmatpush.xpose.msra.mxu0 0.0
  %521 = vmatpush.xpose.msra.mxu0 %v506
  %522 = vmatpush.xpose.msra.mxu0 %v504
  %523 = vmatpush.xpose.msra.mxu0 %v502
  %524 = vmatmul.f32.gmra.mxu0 %v496
  %v525 = vpop.f32.mrf.mxu0
  %v526 = vadd.f32 %v104, %v525
  %527 = vmatmul.f32.gmra.mxu0 %v498
  %v528 = vpop.f32.mrf.mxu0
  %v529 = vadd.f32 %v105, %v528
  %530 = vmatmul.f32.gmra.mxu0 %v500
  %v531 = vpop.f32.mrf.mxu0
  %v532 = vadd.f32 %v106, %v531
  %533 = vdwg.mxu0
  %v534 = vsel %vm197, %v526, -inf
  %535 = vmax.xlane.f32.xlu0 %v534
  %v536 = vpop.xlane.xlu0 %535
  %v537 = vsel %vm197, %v529, -inf
  %538 = vmax.xlane.f32.xlu0 %v537
  %v539 = vpop.xlane.xlu0 %538
  %v540 = vsel %vm204, %v532, -inf
  %541 = vmax.xlane.f32.xlu0 %v540
  %v542 = vpop.xlane.xlu0 %541
  %v543 = vsub.f32 %v526, %v536
  %v544 = vsub.f32 %v529, %v539
  %v545 = vsub.f32 %v532, %v542
  %v546 = vmul.f32 %v543, 1.442695
  %v547 = vpow.pop %v546
  %v548 = vmul.f32 %v544, 1.442695
  %v549 = vpow.pop %v548
  %v550 = vmul.f32 %v545, 1.442695
  %v551 = vpow.pop %v550
  %v552 = vsel %vm197, %v547, 0.0
  %553 = vadd.xlane.f32.xlu0 %v552
  %v554 = vpop.xlane.xlu0 %553
  %v555 = vsel %vm197, %v549, 0.0
  %556 = vadd.xlane.f32.xlu0 %v555
  %v557 = vpop.xlane.xlu0 %556
  %v558 = vsel %vm204, %v551, 0.0
  %559 = vadd.xlane.f32.xlu0 %v558
  %v560 = vpop.xlane.xlu0 %559
  %v561 = vrcp.pop %v554
  %v562 = vmul.f32 %v554, %v561
  %v563 = vsub.f32 1.0, %v562
  %v564 = vmul.f32 %v561, %v563
  %v565 = vadd.f32 %v561, %v564
  %vm566 = vweird.f32 %v554
  %vm567 = vweird.f32 %v561
  %vm568 = vmor %vm566, %vm567
  %v569 = vsel %vm568, %v561, %v565
  %v570 = vand.u32 2147483647, %v554
  %vm571 = vcmp.eq.f32.partialorder %v570, 8.507059e+37
  %v572 = vand.u32 %v554, 2147483648
  %v573 = vor.u32 1.1754944e-38, %v572
  %v574 = vsel %vm571, %v573, %v569
  %v575 = vmul.f32 %v547, %v574
  %v576 = vrcp.pop %v557
  %v577 = vmul.f32 %v557, %v576
  %v578 = vsub.f32 1.0, %v577
  %v579 = vmul.f32 %v576, %v578
  %v580 = vadd.f32 %v576, %v579
  %vm581 = vweird.f32 %v557
  %vm582 = vweird.f32 %v576
  %vm583 = vmor %vm581, %vm582
  %v584 = vsel %vm583, %v576, %v580
  %v585 = vand.u32 2147483647, %v557
  %vm586 = vcmp.eq.f32.partialorder %v585, 8.507059e+37
  %v587 = vand.u32 %v557, 2147483648
  %v588 = vor.u32 1.1754944e-38, %v587
  %v589 = vsel %vm586, %v588, %v584
  %v590 = vmul.f32 %v549, %v589
  %v591 = vrcp.pop %v560
  %v592 = vmul.f32 %v560, %v591
  %v593 = vsub.f32 1.0, %v592
  %v594 = vmul.f32 %v591, %v593
  %v595 = vadd.f32 %v591, %v594
  %vm596 = vweird.f32 %v560
  %vm597 = vweird.f32 %v591
  %vm598 = vmor %vm596, %vm597
  %v599 = vsel %vm598, %v591, %v595
  %v600 = vand.u32 2147483647, %v560
  %vm601 = vcmp.eq.f32.partialorder %v600, 8.507059e+37
  %v602 = vand.u32 %v560, 2147483648
  %v603 = vor.u32 1.1754944e-38, %v602
  %v604 = vsel %vm601, %v603, %v599
  %v605 = vmul.f32 %v551, %v604
  %606 = vrot.lane.b32.xlu0 %v141, 48
  %v607 = vpop.permute.xlu0 %606
  %608 = vrot.lane.b32.xlu0 %v144, 48
  %v609 = vpop.permute.xlu0 %608
  %610 = vrot.lane.b32.xlu0 %v147, 48
  %v611 = vpop.permute.xlu0 %610
  %v615 = vsel %vm197, %v575, 0
  %v618 = vsel %vm197, %v590, 0
  %v621 = vsel %vm197, %v605, 0
  %v623 = vsel %vm288, %v611, 0
  %625 = vmatpush.msra.mxu0 0.0
  %626 = vmatpush.msra.mxu0 0.0
  %627 = vmatpush.msra.mxu0 0.0
  %628 = vmatpush.msra.mxu0 0.0
  %629 = vmatpush.msra.mxu0 0.0
  %630 = vmatpush.msra.mxu0 0.0
  %631 = vmatpush.msra.mxu0 0.0
  %632 = vmatpush.msra.mxu0 0.0
  %633 = vmatpush.msra.mxu0 0.0
  %634 = vmatpush.msra.mxu0 0.0
  %635 = vmatpush.msra.mxu0 0.0
  %636 = vmatpush.msra.mxu0 0.0
  %637 = vmatpush.msra.mxu0 0.0
  %638 = vmatpush.msra.mxu0 %v623
  %639 = vmatpush.msra.mxu0 %v609
  %640 = vmatpush.msra.mxu0 %v607
  %641 = vmatmul.f32.gmra.mxu0 %v615
  %v642 = vpop.f32.mrf.mxu0
  %v643 = vadd.f32 0.0, %v642
  %644 = vmatmul.f32.gmra.mxu0 %v618
  %v645 = vpop.f32.mrf.mxu0
  %v646 = vadd.f32 0.0, %v645
  %647 = vmatmul.f32.gmra.mxu0 %v621
  %v648 = vpop.f32.mrf.mxu0
  %v649 = vadd.f32 0.0, %v648
  %650 = vdwg.mxu0
  %651 = vrot.lane.b32.xlu0 %v141, 104
  %v652 = vpop.permute.xlu0 %651
  %653 = vrot.lane.b32.xlu0 %v144, 104
  %v654 = vpop.permute.xlu0 %653
  %655 = vrot.lane.b32.xlu0 %v147, 104
  %v656 = vpop.permute.xlu0 %655
  %657 = vrot.lane.b32.xlu0 %v141, 72
  %v658 = vpop.permute.xlu0 %657
  %659 = vrot.lane.b32.xlu0 %v144, 72
  %v660 = vpop.permute.xlu0 %659
  %661 = vrot.lane.b32.xlu0 %v147, 72
  %v662 = vpop.permute.xlu0 %661
  %v663 = vsel %vm158, %v652, 0
  %v665 = vsel %vm158, %v654, 0
  %v667 = vsel %vm158, %v656, 0
  %v669 = vsel %vm158, %v658, 0
  %v671 = vsel %vm158, %v660, 0
  %v673 = vsel %vm158, %v662, 0
  %675 = vmatpush.xpose.msra.mxu0 0.0
  %676 = vmatpush.xpose.msra.mxu0 0.0
  %677 = vmatpush.xpose.msra.mxu0 0.0
  %678 = vmatpush.xpose.msra.mxu0 0.0
  %679 = vmatpush.xpose.msra.mxu0 0.0
  %680 = vmatpush.xpose.msra.mxu0 0.0
  %681 = vmatpush.xpose.msra.mxu0 0.0
  %682 = vmatpush.xpose.msra.mxu0 0.0
  %683 = vmatpush.xpose.msra.mxu0 0.0
  %684 = vmatpush.xpose.msra.mxu0 0.0
  %685 = vmatpush.xpose.msra.mxu0 0.0
  %686 = vmatpush.xpose.msra.mxu0 0.0
  %687 = vmatpush.xpose.msra.mxu0 0.0
  %688 = vmatpush.xpose.msra.mxu0 %v673
  %689 = vmatpush.xpose.msra.mxu0 %v671
  %690 = vmatpush.xpose.msra.mxu0 %v669
  %691 = vmatmul.f32.gmra.mxu0 %v663
  %v692 = vpop.f32.mrf.mxu0
  %v693 = vadd.f32 %v104, %v692
  %694 = vmatmul.f32.gmra.mxu0 %v665
  %v695 = vpop.f32.mrf.mxu0
  %v696 = vadd.f32 %v105, %v695
  %697 = vmatmul.f32.gmra.mxu0 %v667
  %v698 = vpop.f32.mrf.mxu0
  %v699 = vadd.f32 %v106, %v698
  %700 = vdwg.mxu0
  %v701 = vsel %vm197, %v693, -inf
  %702 = vmax.xlane.f32.xlu0 %v701
  %v703 = vpop.xlane.xlu0 %702
  %v704 = vsel %vm197, %v696, -inf
  %705 = vmax.xlane.f32.xlu0 %v704
  %v706 = vpop.xlane.xlu0 %705
  %v707 = vsel %vm204, %v699, -inf
  %708 = vmax.xlane.f32.xlu0 %v707
  %v709 = vpop.xlane.xlu0 %708
  %v710 = vsub.f32 %v693, %v703
  %v711 = vsub.f32 %v696, %v706
  %v712 = vsub.f32 %v699, %v709
  %v713 = vmul.f32 %v710, 1.442695
  %v714 = vpow.pop %v713
  %v715 = vmul.f32 %v711, 1.442695
  %v716 = vpow.pop %v715
  %v717 = vmul.f32 %v712, 1.442695
  %v718 = vpow.pop %v717
  %v719 = vsel %vm197, %v714, 0.0
  %720 = vadd.xlane.f32.xlu0 %v719
  %v721 = vpop.xlane.xlu0 %720
  %v722 = vsel %vm197, %v716, 0.0
  %723 = vadd.xlane.f32.xlu0 %v722
  %v724 = vpop.xlane.xlu0 %723
  %v725 = vsel %vm204, %v718, 0.0
  %726 = vadd.xlane.f32.xlu0 %v725
  %v727 = vpop.xlane.xlu0 %726
  %v728 = vrcp.pop %v721
  %v729 = vmul.f32 %v721, %v728
  %v730 = vsub.f32 1.0, %v729
  %v731 = vmul.f32 %v728, %v730
  %v732 = vadd.f32 %v728, %v731
  %vm733 = vweird.f32 %v721
  %vm734 = vweird.f32 %v728
  %vm735 = vmor %vm733, %vm734
  %v736 = vsel %vm735, %v728, %v732
  %v737 = vand.u32 2147483647, %v721
  %vm738 = vcmp.eq.f32.partialorder %v737, 8.507059e+37
  %v739 = vand.u32 %v721, 2147483648
  %v740 = vor.u32 1.1754944e-38, %v739
  %v741 = vsel %vm738, %v740, %v736
  %v742 = vmul.f32 %v714, %v741
  %v743 = vrcp.pop %v724
  %v744 = vmul.f32 %v724, %v743
  %v745 = vsub.f32 1.0, %v744
  %v746 = vmul.f32 %v743, %v745
  %v747 = vadd.f32 %v743, %v746
  %vm748 = vweird.f32 %v724
  %vm749 = vweird.f32 %v743
  %vm750 = vmor %vm748, %vm749
  %v751 = vsel %vm750, %v743, %v747
  %v752 = vand.u32 2147483647, %v724
  %vm753 = vcmp.eq.f32.partialorder %v752, 8.507059e+37
  %v754 = vand.u32 %v724, 2147483648
  %v755 = vor.u32 1.1754944e-38, %v754
  %v756 = vsel %vm753, %v755, %v751
  %v757 = vmul.f32 %v716, %v756
  %v758 = vrcp.pop %v727
  %v759 = vmul.f32 %v727, %v758
  %v760 = vsub.f32 1.0, %v759
  %v761 = vmul.f32 %v758, %v760
  %v762 = vadd.f32 %v758, %v761
  %vm763 = vweird.f32 %v727
  %vm764 = vweird.f32 %v758
  %vm765 = vmor %vm763, %vm764
  %v766 = vsel %vm765, %v758, %v762
  %v767 = vand.u32 2147483647, %v727
  %vm768 = vcmp.eq.f32.partialorder %v767, 8.507059e+37
  %v769 = vand.u32 %v727, 2147483648
  %v770 = vor.u32 1.1754944e-38, %v769
  %v771 = vsel %vm768, %v770, %v766
  %v772 = vmul.f32 %v718, %v771
  %773 = vrot.lane.b32.xlu0 %v141, 40
  %v774 = vpop.permute.xlu0 %773
  %775 = vrot.lane.b32.xlu0 %v144, 40
  %v776 = vpop.permute.xlu0 %775
  %777 = vrot.lane.b32.xlu0 %v147, 40
  %v778 = vpop.permute.xlu0 %777
  %v782 = vsel %vm197, %v742, 0
  %v785 = vsel %vm197, %v757, 0
  %v788 = vsel %vm197, %v772, 0
  %v790 = vsel %vm288, %v778, 0
  %792 = vmatpush.msra.mxu0 0.0
  %793 = vmatpush.msra.mxu0 0.0
  %794 = vmatpush.msra.mxu0 0.0
  %795 = vmatpush.msra.mxu0 0.0
  %796 = vmatpush.msra.mxu0 0.0
  %797 = vmatpush.msra.mxu0 0.0
  %798 = vmatpush.msra.mxu0 0.0
  %799 = vmatpush.msra.mxu0 0.0
  %800 = vmatpush.msra.mxu0 0.0
  %801 = vmatpush.msra.mxu0 0.0
  %802 = vmatpush.msra.mxu0 0.0
  %803 = vmatpush.msra.mxu0 0.0
  %804 = vmatpush.msra.mxu0 0.0
  %805 = vmatpush.msra.mxu0 %v790
  %806 = vmatpush.msra.mxu0 %v776
  %807 = vmatpush.msra.mxu0 %v774
  %808 = vmatmul.f32.gmra.mxu0 %v782
  %v809 = vpop.f32.mrf.mxu0
  %v810 = vadd.f32 0.0, %v809
  %811 = vmatmul.f32.gmra.mxu0 %v785
  %v812 = vpop.f32.mrf.mxu0
  %v813 = vadd.f32 0.0, %v812
  %814 = vmatmul.f32.gmra.mxu0 %v788
  %v815 = vpop.f32.mrf.mxu0
  %v816 = vadd.f32 0.0, %v815
  %817 = vdwg.mxu0
  %821 = vrot.lane.b32.xlu0 %v476, 8
  %v822 = vpop.permute.xlu0 %821
  %823 = vrot.lane.b32.xlu0 %v479, 8
  %v824 = vpop.permute.xlu0 %823
  %825 = vrot.lane.b32.xlu0 %v482, 8
  %v826 = vpop.permute.xlu0 %825
  %833 = vrot.lane.b32.xlu0 %v643, 16
  %v834 = vpop.permute.xlu0 %833
  %835 = vrot.lane.b32.xlu0 %v646, 16
  %v836 = vpop.permute.xlu0 %835
  %837 = vrot.lane.b32.xlu0 %v649, 16
  %v838 = vpop.permute.xlu0 %837
  %845 = vrot.lane.b32.xlu0 %v810, 24
  %v846 = vpop.permute.xlu0 %845
  %847 = vrot.lane.b32.xlu0 %v813, 24
  %v848 = vpop.permute.xlu0 %847
  %849 = vrot.lane.b32.xlu0 %v816, 24
  %v850 = vpop.permute.xlu0 %849
  %v854 = vsel %vm158, %v309, %v822
  %v855 = vsel %vm158, %v312, %v824
  %v856 = vsel %vm158, %v315, %v826
  %vm857 = vcmask 130048
  %v858 = vsel %vm857, %v854, %v834
  %v859 = vsel %vm857, %v855, %v836
  %v860 = vsel %vm857, %v856, %v838
  %vm861 = vcmask 195584
  %v862 = vsel %vm861, %v858, %v846
  %v863 = vsel %vm861, %v859, %v848
  %v864 = vsel %vm861, %v860, %v850
  %v865 = vld [vmem:[%s3] sm:$0xff]
  %v866 = vld [vmem:[%s3 + $0x8] sm:$0xff]
  %v867 = vld [vmem:[%s3 + $0x10] sm:$0xff]
  %v868 = vld [vmem:[%s3 + $0x18] sm:$0xff]
  %v869 = vperm.slane %v107, 1
  %v871 = vsel %vm113, %v862, 0
  %v874 = vsel %vm113, %v863, 0
  %v877 = vsel %vm113, %v864, 0
  %879 = vmatpush.msra.mxu0 0.0
  %880 = vmatpush.msra.mxu0 0.0
  %881 = vmatpush.msra.mxu0 0.0
  %882 = vmatpush.msra.mxu0 0.0
  %883 = vmatpush.msra.mxu0 0.0
  %884 = vmatpush.msra.mxu0 0.0
  %885 = vmatpush.msra.mxu0 0.0
  %886 = vmatpush.msra.mxu0 0.0
  %887 = vmatpush.msra.mxu0 0.0
  %888 = vmatpush.msra.mxu0 0.0
  %889 = vmatpush.msra.mxu0 0.0
  %890 = vmatpush.msra.mxu0 0.0
  %891 = vmatpush.msra.mxu0 %v868
  %892 = vmatpush.msra.mxu0 %v867
  %893 = vmatpush.msra.mxu0 %v866
  %894 = vmatpush.msra.mxu0 %v865
  %895 = vmatmul.f32.gmra.mxu0 %v871
  %v896 = vpop.f32.mrf.mxu0
  %v897 = vadd.f32 %v869, %v896
  %898 = vmatmul.f32.gmra.mxu0 %v874
  %v899 = vpop.f32.mrf.mxu0
  %v900 = vadd.f32 %v869, %v899
  %901 = vmatmul.f32.gmra.mxu0 %v877
  %v902 = vpop.f32.mrf.mxu0
  %v903 = vadd.f32 %v869, %v902
  %904 = vdwg.mxu0
  %v905 = vadd.f32 %v30, %v897
  %v906 = vadd.f32 %v31, %v900
  %v907 = vadd.f32 %v32, %v903
  %v908 = vsel %vm113, %v905, 0.0
  %909 = vadd.xlane.f32.xlu0 %v908
  %v910 = vpop.xlane.xlu0 %909
  %v911 = vsel %vm113, %v906, 0.0
  %912 = vadd.xlane.f32.xlu0 %v911
  %v913 = vpop.xlane.xlu0 %912
  %vm914 = vcmask 259072
  %v915 = vsel %vm914, %v907, 0.0
  %916 = vadd.xlane.f32.xlu0 %v915
  %v917 = vpop.xlane.xlu0 %916
  %v918 = vrcp.pop 32.0
  %v919 = vmul.f32 32.0, %v918
  %v920 = vsub.f32 1.0, %v919
  %v921 = vmul.f32 %v918, %v920
  %v922 = vadd.f32 %v918, %v921
  %vm923 = vweird.f32 %v918
  %v924 = vsel %vm923, %v918, %v922
  %v925 = vmul.f32 %v910, %v924
  %v926 = vmul.f32 %v913, %v924
  %v927 = vmul.f32 %v917, %v924
  %v928 = vsub.f32 %v905, %v925
  %v929 = vsub.f32 %v906, %v926
  %v930 = vsub.f32 %v907, %v927
  %v931 = vmul.f32 %v928, %v928
  %v932 = vmul.f32 %v929, %v929
  %v933 = vmul.f32 %v930, %v930
  %v934 = vsel %vm113, %v931, 0.0
  %935 = vadd.xlane.f32.xlu0 %v934
  %v936 = vpop.xlane.xlu0 %935
  %v937 = vsel %vm113, %v932, 0.0
  %938 = vadd.xlane.f32.xlu0 %v937
  %v939 = vpop.xlane.xlu0 %938
  %v940 = vsel %vm914, %v933, 0.0
  %941 = vadd.xlane.f32.xlu0 %v940
  %v942 = vpop.xlane.xlu0 %941
  %v943 = vmul.f32 %v936, %v924
  %v944 = vmul.f32 %v939, %v924
  %v945 = vmul.f32 %v942, %v924
  %v946 = vadd.f32 %v943, 1e-05
  %v947 = vadd.f32 %v944, 1e-05
  %v948 = vadd.f32 %v945, 1e-05
  %v949 = vrsqrt.pop %v946
  %v950 = vmul.f32 %v949, %v946
  %v951 = vmul.f32 %v950, %v949
  %v952 = vmul.f32 0.5, %v951
  %v953 = vsub.f32 1.5, %v952
  %v954 = vmul.f32 %v949, %v953
  %vm955 = vweird.f32 %v946
  %vm956 = vweird.f32 %v949
  %vm957 = vmor %vm955, %vm956
  %v958 = vsel %vm957, %v949, %v954
  %v959 = vrsqrt.pop %v947
  %v960 = vmul.f32 %v959, %v947
  %v961 = vmul.f32 %v960, %v959
  %v962 = vmul.f32 0.5, %v961
  %v963 = vsub.f32 1.5, %v962
  %v964 = vmul.f32 %v959, %v963
  %vm965 = vweird.f32 %v947
  %vm966 = vweird.f32 %v959
  %vm967 = vmor %vm965, %vm966
  %v968 = vsel %vm967, %v959, %v964
  %v969 = vrsqrt.pop %v948
  %v970 = vmul.f32 %v969, %v948
  %v971 = vmul.f32 %v970, %v969
  %v972 = vmul.f32 0.5, %v971
  %v973 = vsub.f32 1.5, %v972
  %v974 = vmul.f32 %v969, %v973
  %vm975 = vweird.f32 %v948
  %vm976 = vweird.f32 %v969
  %vm977 = vmor %vm975, %vm976
  %v978 = vsel %vm977, %v969, %v974
  %v979 = vmul.f32 %v928, %v958
  %v980 = vmul.f32 %v929, %v968
  %v981 = vmul.f32 %v930, %v978
  %v982 = vperm.slane %v107, 4
  %v983 = vmul.f32 %v979, %v982
  %v984 = vmul.f32 %v980, %v982
  %v985 = vmul.f32 %v981, %v982
  %v986 = vperm.slane %v107, 5
  %v987 = vadd.f32 %v983, %v986
  %v988 = vadd.f32 %v984, %v986
  %v989 = vadd.f32 %v985, %v986
  %v990 = vld [vmem:[%s4] sm:$0xff]
  %v991 = vld [vmem:[%s4 + $0x8] sm:$0xff]
  %v992 = vld [vmem:[%s4 + $0x10] sm:$0xff]
  %v993 = vld [vmem:[%s4 + $0x18] sm:$0xff]
  %v994 = vperm.slane %v107, 2
  %v996 = vsel %vm113, %v987, 0
  %v999 = vsel %vm113, %v988, 0
  %v1002 = vsel %vm113, %v989, 0
  %1004 = vmatpush.msra.mxu0 0.0
  %1005 = vmatpush.msra.mxu0 0.0
  %1006 = vmatpush.msra.mxu0 0.0
  %1007 = vmatpush.msra.mxu0 0.0
  %1008 = vmatpush.msra.mxu0 0.0
  %1009 = vmatpush.msra.mxu0 0.0
  %1010 = vmatpush.msra.mxu0 0.0
  %1011 = vmatpush.msra.mxu0 0.0
  %1012 = vmatpush.msra.mxu0 0.0
  %1013 = vmatpush.msra.mxu0 0.0
  %1014 = vmatpush.msra.mxu0 0.0
  %1015 = vmatpush.msra.mxu0 0.0
  %1016 = vmatpush.msra.mxu0 %v993
  %1017 = vmatpush.msra.mxu0 %v992
  %1018 = vmatpush.msra.mxu0 %v991
  %1019 = vmatpush.msra.mxu0 %v990
  %1020 = vmatmul.f32.gmra.mxu0 %v996
  %v1021 = vpop.f32.mrf.mxu0
  %v1022 = vadd.f32 %v994, %v1021
  %1023 = vmatmul.f32.gmra.mxu0 %v999
  %v1024 = vpop.f32.mrf.mxu0
  %v1025 = vadd.f32 %v994, %v1024
  %1026 = vmatmul.f32.gmra.mxu0 %v1002
  %v1027 = vpop.f32.mrf.mxu0
  %v1028 = vadd.f32 %v994, %v1027
  %1029 = vdwg.mxu0
  %v1030 = vmax.f32 %v1022, 0.0
  %v1031 = vmax.f32 %v1025, 0.0
  %v1032 = vmax.f32 %v1028, 0.0
  %v1033 = vld [vmem:[%s5] sm:$0xff]
  %v1034 = vld [vmem:[%s5 + $0x8] sm:$0xff]
  %v1035 = vld [vmem:[%s5 + $0x10] sm:$0xff]
  %v1036 = vld [vmem:[%s5 + $0x18] sm:$0xff]
  %v1037 = vld [vmem:[%s5 + $0x20] sm:$0xff]
  %v1038 = vld [vmem:[%s5 + $0x28] sm:$0xff]
  %v1039 = vld [vmem:[%s5 + $0x30] sm:$0xff]
  %v1040 = vld [vmem:[%s5 + $0x38] sm:$0xff]
  %v1041 = vld [vmem:[%s5 + $0x40] sm:$0xff]
  %v1042 = vld [vmem:[%s5 + $0x48] sm:$0xff]
  %v1043 = vld [vmem:[%s5 + $0x50] sm:$0xff]
  %v1044 = vld [vmem:[%s5 + $0x58] sm:$0xff]
  %v1045 = vld [vmem:[%s5 + $0x60] sm:$0xff]
  %v1046 = vld [vmem:[%s5 + $0x68] sm:$0xff]
  %v1047 = vld [vmem:[%s5 + $0x70] sm:$0xff]
  %v1048 = vld [vmem:[%s5 + $0x78] sm:$0xff]
  %v1049 = vperm.slane %v107, 3
  %1050 = vmatpush.msra.mxu0 %v1048
  %1051 = vmatpush.msra.mxu0 %v1047
  %1052 = vmatpush.msra.mxu0 %v1046
  %1053 = vmatpush.msra.mxu0 %v1045
  %1054 = vmatpush.msra.mxu0 %v1044
  %1055 = vmatpush.msra.mxu0 %v1043
  %1056 = vmatpush.msra.mxu0 %v1042
  %1057 = vmatpush.msra.mxu0 %v1041
  %1058 = vmatpush.msra.mxu0 %v1040
  %1059 = vmatpush.msra.mxu0 %v1039
  %1060 = vmatpush.msra.mxu0 %v1038
  %1061 = vmatpush.msra.mxu0 %v1037
  %1062 = vmatpush.msra.mxu0 %v1036
  %1063 = vmatpush.msra.mxu0 %v1035
  %1064 = vmatpush.msra.mxu0 %v1034
  %1065 = vmatpush.msra.mxu0 %v1033
  %1066 = vmatmul.f32.gmra.mxu0 %v1030
  %v1067 = vpop.f32.mrf.mxu0
  %v1068 = vadd.f32 %v1049, %v1067
  %1069 = vmatmul.f32.gmra.mxu0 %v1031
  %v1070 = vpop.f32.mrf.mxu0
  %v1071 = vadd.f32 %v1049, %v1070
  %1072 = vmatmul.f32.gmra.mxu0 %v1032
  %v1073 = vpop.f32.mrf.mxu0
  %v1074 = vadd.f32 %v1049, %v1073
  %1075 = vdwg.mxu0
  %v1076 = vadd.f32 %v987, %v1068
  %v1077 = vadd.f32 %v988, %v1071
  %v1078 = vadd.f32 %v989, %v1074
  %v1079 = vsel %vm113, %v1076, 0.0
  %1080 = vadd.xlane.f32.xlu0 %v1079
  %v1081 = vpop.xlane.xlu0 %1080
  %v1082 = vsel %vm113, %v1077, 0.0
  %1083 = vadd.xlane.f32.xlu0 %v1082
  %v1084 = vpop.xlane.xlu0 %1083
  %v1085 = vsel %vm914, %v1078, 0.0
  %1086 = vadd.xlane.f32.xlu0 %v1085
  %v1087 = vpop.xlane.xlu0 %1086
  %v1088 = vmul.f32 %v1081, %v924
  %v1089 = vmul.f32 %v1084, %v924
  %v1090 = vmul.f32 %v1087, %v924
  %v1091 = vsub.f32 %v1076, %v1088
  %v1092 = vsub.f32 %v1077, %v1089
  %v1093 = vsub.f32 %v1078, %v1090
  %v1094 = vmul.f32 %v1091, %v1091
  %v1095 = vmul.f32 %v1092, %v1092
  %v1096 = vmul.f32 %v1093, %v1093
  %v1097 = vsel %vm113, %v1094, 0.0
  %1098 = vadd.xlane.f32.xlu0 %v1097
  %v1099 = vpop.xlane.xlu0 %1098
  %v1100 = vsel %vm113, %v1095, 0.0
  %1101 = vadd.xlane.f32.xlu0 %v1100
  %v1102 = vpop.xlane.xlu0 %1101
  %v1103 = vsel %vm914, %v1096, 0.0
  %1104 = vadd.xlane.f32.xlu0 %v1103
  %v1105 = vpop.xlane.xlu0 %1104
  %v1106 = vmul.f32 %v1099, %v924
  %v1107 = vmul.f32 %v1102, %v924
  %v1108 = vmul.f32 %v1105, %v924
  %v1109 = vadd.f32 %v1106, 1e-05
  %v1110 = vadd.f32 %v1107, 1e-05
  %v1111 = vadd.f32 %v1108, 1e-05
  %v1112 = vrsqrt.pop %v1109
  %v1113 = vmul.f32 %v1112, %v1109
  %v1114 = vmul.f32 %v1113, %v1112
  %v1115 = vmul.f32 0.5, %v1114
  %v1116 = vsub.f32 1.5, %v1115
  %v1117 = vmul.f32 %v1112, %v1116
  %vm1118 = vweird.f32 %v1109
  %vm1119 = vweird.f32 %v1112
  %vm1120 = vmor %vm1118, %vm1119
  %v1121 = vsel %vm1120, %v1112, %v1117
  %v1122 = vrsqrt.pop %v1110
  %v1123 = vmul.f32 %v1122, %v1110
  %v1124 = vmul.f32 %v1123, %v1122
  %v1125 = vmul.f32 0.5, %v1124
  %v1126 = vsub.f32 1.5, %v1125
  %v1127 = vmul.f32 %v1122, %v1126
  %vm1128 = vweird.f32 %v1110
  %vm1129 = vweird.f32 %v1122
  %vm1130 = vmor %vm1128, %vm1129
  %v1131 = vsel %vm1130, %v1122, %v1127
  %v1132 = vrsqrt.pop %v1111
  %v1133 = vmul.f32 %v1132, %v1111
  %v1134 = vmul.f32 %v1133, %v1132
  %v1135 = vmul.f32 0.5, %v1134
  %v1136 = vsub.f32 1.5, %v1135
  %v1137 = vmul.f32 %v1132, %v1136
  %vm1138 = vweird.f32 %v1111
  %vm1139 = vweird.f32 %v1132
  %vm1140 = vmor %vm1138, %vm1139
  %v1141 = vsel %vm1140, %v1132, %v1137
  %v1142 = vmul.f32 %v1091, %v1121
  %v1143 = vmul.f32 %v1092, %v1131
  %v1144 = vmul.f32 %v1093, %v1141
  %v1145 = vperm.slane %v107, 6
  %v1146 = vmul.f32 %v1142, %v1145
  %v1147 = vmul.f32 %v1143, %v1145
  %v1148 = vmul.f32 %v1144, %v1145
  %v1149 = vperm.slane %v107, 7
  %v1150 = vadd.f32 %v1146, %v1149
  %v1151 = vadd.f32 %v1147, %v1149
  %v1152 = vadd.f32 %v1148, %v1149
  %s1153 = scalar_lea.vmem %s6, 8
  %v1154 = vld [vmem:[%s1153] sm:$0xff]
  %s1155 = scalar_lea.vmem %s2, 32
  %v1156 = vld [vmem:[%s1155] sm:$0xff]
  %v1157 = vld [vmem:[%s1155 + $0x8] sm:$0xff]
  %v1158 = vld [vmem:[%s1155 + $0x10] sm:$0xff]
  %v1159 = vld [vmem:[%s1155 + $0x18] sm:$0xff]
  %v1160 = vperm.slane %v1154, 0
  %v1162 = vsel %vm113, %v1150, 0
  %v1165 = vsel %vm113, %v1151, 0
  %v1168 = vsel %vm113, %v1152, 0
  %1170 = vmatpush.msra.mxu0 0.0
  %1171 = vmatpush.msra.mxu0 0.0
  %1172 = vmatpush.msra.mxu0 0.0
  %1173 = vmatpush.msra.mxu0 0.0
  %1174 = vmatpush.msra.mxu0 0.0
  %1175 = vmatpush.msra.mxu0 0.0
  %1176 = vmatpush.msra.mxu0 0.0
  %1177 = vmatpush.msra.mxu0 0.0
  %1178 = vmatpush.msra.mxu0 0.0
  %1179 = vmatpush.msra.mxu0 0.0
  %1180 = vmatpush.msra.mxu0 0.0
  %1181 = vmatpush.msra.mxu0 0.0
  %1182 = vmatpush.msra.mxu0 %v1159
  %1183 = vmatpush.msra.mxu0 %v1158
  %1184 = vmatpush.msra.mxu0 %v1157
  %1185 = vmatpush.msra.mxu0 %v1156
  %1186 = vmatmul.f32.gmra.mxu0 %v1162
  %v1187 = vpop.f32.mrf.mxu0
  %v1188 = vadd.f32 %v1160, %v1187
  %1189 = vmatmul.f32.gmra.mxu0 %v1165
  %v1190 = vpop.f32.mrf.mxu0
  %v1191 = vadd.f32 %v1160, %v1190
  %1192 = vmatmul.f32.gmra.mxu0 %v1168
  %v1193 = vpop.f32.mrf.mxu0
  %v1194 = vadd.f32 %v1160, %v1193
  %1195 = vdwg.mxu0
  %1199 = vrot.lane.b32.xlu0 %v1188, 96
  %v1200 = vpop.permute.xlu0 %1199
  %1201 = vrot.lane.b32.xlu0 %v1191, 96
  %v1202 = vpop.permute.xlu0 %1201
  %1203 = vrot.lane.b32.xlu0 %v1194, 96
  %v1204 = vpop.permute.xlu0 %1203
  %v1205 = vsel %vm158, %v1188, 0
  %v1207 = vsel %vm158, %v1191, 0
  %v1209 = vsel %vm158, %v1194, 0
  %v1211 = vsel %vm158, %v1200, 0
  %v1213 = vsel %vm158, %v1202, 0
  %v1215 = vsel %vm158, %v1204, 0
  %1217 = vmatpush.xpose.msra.mxu0 0.0
  %1218 = vmatpush.xpose.msra.mxu0 0.0
  %1219 = vmatpush.xpose.msra.mxu0 0.0
  %1220 = vmatpush.xpose.msra.mxu0 0.0
  %1221 = vmatpush.xpose.msra.mxu0 0.0
  %1222 = vmatpush.xpose.msra.mxu0 0.0
  %1223 = vmatpush.xpose.msra.mxu0 0.0
  %1224 = vmatpush.xpose.msra.mxu0 0.0
  %1225 = vmatpush.xpose.msra.mxu0 0.0
  %1226 = vmatpush.xpose.msra.mxu0 0.0
  %1227 = vmatpush.xpose.msra.mxu0 0.0
  %1228 = vmatpush.xpose.msra.mxu0 0.0
  %1229 = vmatpush.xpose.msra.mxu0 0.0
  %1230 = vmatpush.xpose.msra.mxu0 %v1215
  %1231 = vmatpush.xpose.msra.mxu0 %v1213
  %1232 = vmatpush.xpose.msra.mxu0 %v1211
  %1233 = vmatmul.f32.gmra.mxu0 %v1205
  %v1234 = vpop.f32.mrf.mxu0
  %v1235 = vadd.f32 %v104, %v1234
  %1236 = vmatmul.f32.gmra.mxu0 %v1207
  %v1237 = vpop.f32.mrf.mxu0
  %v1238 = vadd.f32 %v105, %v1237
  %1239 = vmatmul.f32.gmra.mxu0 %v1209
  %v1240 = vpop.f32.mrf.mxu0
  %v1241 = vadd.f32 %v106, %v1240
  %1242 = vdwg.mxu0
  %v1243 = vsel %vm197, %v1235, -inf
  %1244 = vmax.xlane.f32.xlu0 %v1243
  %v1245 = vpop.xlane.xlu0 %1244
  %v1246 = vsel %vm197, %v1238, -inf
  %1247 = vmax.xlane.f32.xlu0 %v1246
  %v1248 = vpop.xlane.xlu0 %1247
  %v1249 = vsel %vm204, %v1241, -inf
  %1250 = vmax.xlane.f32.xlu0 %v1249
  %v1251 = vpop.xlane.xlu0 %1250
  %v1252 = vsub.f32 %v1235, %v1245
  %v1253 = vsub.f32 %v1238, %v1248
  %v1254 = vsub.f32 %v1241, %v1251
  %v1255 = vmul.f32 %v1252, 1.442695
  %v1256 = vpow.pop %v1255
  %v1257 = vmul.f32 %v1253, 1.442695
  %v1258 = vpow.pop %v1257
  %v1259 = vmul.f32 %v1254, 1.442695
  %v1260 = vpow.pop %v1259
  %v1261 = vsel %vm197, %v1256, 0.0
  %1262 = vadd.xlane.f32.xlu0 %v1261
  %v1263 = vpop.xlane.xlu0 %1262
  %v1264 = vsel %vm197, %v1258, 0.0
  %1265 = vadd.xlane.f32.xlu0 %v1264
  %v1266 = vpop.xlane.xlu0 %1265
  %v1267 = vsel %vm204, %v1260, 0.0
  %1268 = vadd.xlane.f32.xlu0 %v1267
  %v1269 = vpop.xlane.xlu0 %1268
  %v1270 = vrcp.pop %v1263
  %v1271 = vmul.f32 %v1263, %v1270
  %v1272 = vsub.f32 1.0, %v1271
  %v1273 = vmul.f32 %v1270, %v1272
  %v1274 = vadd.f32 %v1270, %v1273
  %vm1275 = vweird.f32 %v1263
  %vm1276 = vweird.f32 %v1270
  %vm1277 = vmor %vm1275, %vm1276
  %v1278 = vsel %vm1277, %v1270, %v1274
  %v1279 = vand.u32 2147483647, %v1263
  %vm1280 = vcmp.eq.f32.partialorder %v1279, 8.507059e+37
  %v1281 = vand.u32 %v1263, 2147483648
  %v1282 = vor.u32 1.1754944e-38, %v1281
  %v1283 = vsel %vm1280, %v1282, %v1278
  %v1284 = vmul.f32 %v1256, %v1283
  %v1285 = vrcp.pop %v1266
  %v1286 = vmul.f32 %v1266, %v1285
  %v1287 = vsub.f32 1.0, %v1286
  %v1288 = vmul.f32 %v1285, %v1287
  %v1289 = vadd.f32 %v1285, %v1288
  %vm1290 = vweird.f32 %v1266
  %vm1291 = vweird.f32 %v1285
  %vm1292 = vmor %vm1290, %vm1291
  %v1293 = vsel %vm1292, %v1285, %v1289
  %v1294 = vand.u32 2147483647, %v1266
  %vm1295 = vcmp.eq.f32.partialorder %v1294, 8.507059e+37
  %v1296 = vand.u32 %v1266, 2147483648
  %v1297 = vor.u32 1.1754944e-38, %v1296
  %v1298 = vsel %vm1295, %v1297, %v1293
  %v1299 = vmul.f32 %v1258, %v1298
  %v1300 = vrcp.pop %v1269
  %v1301 = vmul.f32 %v1269, %v1300
  %v1302 = vsub.f32 1.0, %v1301
  %v1303 = vmul.f32 %v1300, %v1302
  %v1304 = vadd.f32 %v1300, %v1303
  %vm1305 = vweird.f32 %v1269
  %vm1306 = vweird.f32 %v1300
  %vm1307 = vmor %vm1305, %vm1306
  %v1308 = vsel %vm1307, %v1300, %v1304
  %v1309 = vand.u32 2147483647, %v1269
  %vm1310 = vcmp.eq.f32.partialorder %v1309, 8.507059e+37
  %v1311 = vand.u32 %v1269, 2147483648
  %v1312 = vor.u32 1.1754944e-38, %v1311
  %v1313 = vsel %vm1310, %v1312, %v1308
  %v1314 = vmul.f32 %v1260, %v1313
  %1315 = vrot.lane.b32.xlu0 %v1188, 64
  %v1316 = vpop.permute.xlu0 %1315
  %1317 = vrot.lane.b32.xlu0 %v1191, 64
  %v1318 = vpop.permute.xlu0 %1317
  %1319 = vrot.lane.b32.xlu0 %v1194, 64
  %v1320 = vpop.permute.xlu0 %1319
  %v1324 = vsel %vm197, %v1284, 0
  %v1327 = vsel %vm197, %v1299, 0
  %v1330 = vsel %vm197, %v1314, 0
  %v1332 = vsel %vm288, %v1320, 0
  %1334 = vmatpush.msra.mxu0 0.0
  %1335 = vmatpush.msra.mxu0 0.0
  %1336 = vmatpush.msra.mxu0 0.0
  %1337 = vmatpush.msra.mxu0 0.0
  %1338 = vmatpush.msra.mxu0 0.0
  %1339 = vmatpush.msra.mxu0 0.0
  %1340 = vmatpush.msra.mxu0 0.0
  %1341 = vmatpush.msra.mxu0 0.0
  %1342 = vmatpush.msra.mxu0 0.0
  %1343 = vmatpush.msra.mxu0 0.0
  %1344 = vmatpush.msra.mxu0 0.0
  %1345 = vmatpush.msra.mxu0 0.0
  %1346 = vmatpush.msra.mxu0 0.0
  %1347 = vmatpush.msra.mxu0 %v1332
  %1348 = vmatpush.msra.mxu0 %v1318
  %1349 = vmatpush.msra.mxu0 %v1316
  %1350 = vmatmul.f32.gmra.mxu0 %v1324
  %v1351 = vpop.f32.mrf.mxu0
  %v1352 = vadd.f32 0.0, %v1351
  %1353 = vmatmul.f32.gmra.mxu0 %v1327
  %v1354 = vpop.f32.mrf.mxu0
  %v1355 = vadd.f32 0.0, %v1354
  %1356 = vmatmul.f32.gmra.mxu0 %v1330
  %v1357 = vpop.f32.mrf.mxu0
  %v1358 = vadd.f32 0.0, %v1357
  %1359 = vdwg.mxu0
  %1360 = vrot.lane.b32.xlu0 %v1188, 120
  %v1361 = vpop.permute.xlu0 %1360
  %1362 = vrot.lane.b32.xlu0 %v1191, 120
  %v1363 = vpop.permute.xlu0 %1362
  %1364 = vrot.lane.b32.xlu0 %v1194, 120
  %v1365 = vpop.permute.xlu0 %1364
  %1366 = vrot.lane.b32.xlu0 %v1188, 88
  %v1367 = vpop.permute.xlu0 %1366
  %1368 = vrot.lane.b32.xlu0 %v1191, 88
  %v1369 = vpop.permute.xlu0 %1368
  %1370 = vrot.lane.b32.xlu0 %v1194, 88
  %v1371 = vpop.permute.xlu0 %1370
  %v1372 = vsel %vm158, %v1361, 0
  %v1374 = vsel %vm158, %v1363, 0
  %v1376 = vsel %vm158, %v1365, 0
  %v1378 = vsel %vm158, %v1367, 0
  %v1380 = vsel %vm158, %v1369, 0
  %v1382 = vsel %vm158, %v1371, 0
  %1384 = vmatpush.xpose.msra.mxu0 0.0
  %1385 = vmatpush.xpose.msra.mxu0 0.0
  %1386 = vmatpush.xpose.msra.mxu0 0.0
  %1387 = vmatpush.xpose.msra.mxu0 0.0
  %1388 = vmatpush.xpose.msra.mxu0 0.0
  %1389 = vmatpush.xpose.msra.mxu0 0.0
  %1390 = vmatpush.xpose.msra.mxu0 0.0
  %1391 = vmatpush.xpose.msra.mxu0 0.0
  %1392 = vmatpush.xpose.msra.mxu0 0.0
  %1393 = vmatpush.xpose.msra.mxu0 0.0
  %1394 = vmatpush.xpose.msra.mxu0 0.0
  %1395 = vmatpush.xpose.msra.mxu0 0.0
  %1396 = vmatpush.xpose.msra.mxu0 0.0
  %1397 = vmatpush.xpose.msra.mxu0 %v1382
  %1398 = vmatpush.xpose.msra.mxu0 %v1380
  %1399 = vmatpush.xpose.msra.mxu0 %v1378
  %1400 = vmatmul.f32.gmra.mxu0 %v1372
  %v1401 = vpop.f32.mrf.mxu0
  %v1402 = vadd.f32 %v104, %v1401
  %1403 = vmatmul.f32.gmra.mxu0 %v1374
  %v1404 = vpop.f32.mrf.mxu0
  %v1405 = vadd.f32 %v105, %v1404
  %1406 = vmatmul.f32.gmra.mxu0 %v1376
  %v1407 = vpop.f32.mrf.mxu0
  %v1408 = vadd.f32 %v106, %v1407
  %1409 = vdwg.mxu0
  %v1410 = vsel %vm197, %v1402, -inf
  %1411 = vmax.xlane.f32.xlu0 %v1410
  %v1412 = vpop.xlane.xlu0 %1411
  %v1413 = vsel %vm197, %v1405, -inf
  %1414 = vmax.xlane.f32.xlu0 %v1413
  %v1415 = vpop.xlane.xlu0 %1414
  %v1416 = vsel %vm204, %v1408, -inf
  %1417 = vmax.xlane.f32.xlu0 %v1416
  %v1418 = vpop.xlane.xlu0 %1417
  %v1419 = vsub.f32 %v1402, %v1412
  %v1420 = vsub.f32 %v1405, %v1415
  %v1421 = vsub.f32 %v1408, %v1418
  %v1422 = vmul.f32 %v1419, 1.442695
  %v1423 = vpow.pop %v1422
  %v1424 = vmul.f32 %v1420, 1.442695
  %v1425 = vpow.pop %v1424
  %v1426 = vmul.f32 %v1421, 1.442695
  %v1427 = vpow.pop %v1426
  %v1428 = vsel %vm197, %v1423, 0.0
  %1429 = vadd.xlane.f32.xlu0 %v1428
  %v1430 = vpop.xlane.xlu0 %1429
  %v1431 = vsel %vm197, %v1425, 0.0
  %1432 = vadd.xlane.f32.xlu0 %v1431
  %v1433 = vpop.xlane.xlu0 %1432
  %v1434 = vsel %vm204, %v1427, 0.0
  %1435 = vadd.xlane.f32.xlu0 %v1434
  %v1436 = vpop.xlane.xlu0 %1435
  %v1437 = vrcp.pop %v1430
  %v1438 = vmul.f32 %v1430, %v1437
  %v1439 = vsub.f32 1.0, %v1438
  %v1440 = vmul.f32 %v1437, %v1439
  %v1441 = vadd.f32 %v1437, %v1440
  %vm1442 = vweird.f32 %v1430
  %vm1443 = vweird.f32 %v1437
  %vm1444 = vmor %vm1442, %vm1443
  %v1445 = vsel %vm1444, %v1437, %v1441
  %v1446 = vand.u32 2147483647, %v1430
  %vm1447 = vcmp.eq.f32.partialorder %v1446, 8.507059e+37
  %v1448 = vand.u32 %v1430, 2147483648
  %v1449 = vor.u32 1.1754944e-38, %v1448
  %v1450 = vsel %vm1447, %v1449, %v1445
  %v1451 = vmul.f32 %v1423, %v1450
  %v1452 = vrcp.pop %v1433
  %v1453 = vmul.f32 %v1433, %v1452
  %v1454 = vsub.f32 1.0, %v1453
  %v1455 = vmul.f32 %v1452, %v1454
  %v1456 = vadd.f32 %v1452, %v1455
  %vm1457 = vweird.f32 %v1433
  %vm1458 = vweird.f32 %v1452
  %vm1459 = vmor %vm1457, %vm1458
  %v1460 = vsel %vm1459, %v1452, %v1456
  %v1461 = vand.u32 2147483647, %v1433
  %vm1462 = vcmp.eq.f32.partialorder %v1461, 8.507059e+37
  %v1463 = vand.u32 %v1433, 2147483648
  %v1464 = vor.u32 1.1754944e-38, %v1463
  %v1465 = vsel %vm1462, %v1464, %v1460
  %v1466 = vmul.f32 %v1425, %v1465
  %v1467 = vrcp.pop %v1436
  %v1468 = vmul.f32 %v1436, %v1467
  %v1469 = vsub.f32 1.0, %v1468
  %v1470 = vmul.f32 %v1467, %v1469
  %v1471 = vadd.f32 %v1467, %v1470
  %vm1472 = vweird.f32 %v1436
  %vm1473 = vweird.f32 %v1467
  %vm1474 = vmor %vm1472, %vm1473
  %v1475 = vsel %vm1474, %v1467, %v1471
  %v1476 = vand.u32 2147483647, %v1436
  %vm1477 = vcmp.eq.f32.partialorder %v1476, 8.507059e+37
  %v1478 = vand.u32 %v1436, 2147483648
  %v1479 = vor.u32 1.1754944e-38, %v1478
  %v1480 = vsel %vm1477, %v1479, %v1475
  %v1481 = vmul.f32 %v1427, %v1480
  %1482 = vrot.lane.b32.xlu0 %v1188, 56
  %v1483 = vpop.permute.xlu0 %1482
  %1484 = vrot.lane.b32.xlu0 %v1191, 56
  %v1485 = vpop.permute.xlu0 %1484
  %1486 = vrot.lane.b32.xlu0 %v1194, 56
  %v1487 = vpop.permute.xlu0 %1486
  %v1491 = vsel %vm197, %v1451, 0
  %v1494 = vsel %vm197, %v1466, 0
  %v1497 = vsel %vm197, %v1481, 0
  %v1499 = vsel %vm288, %v1487, 0
  %1501 = vmatpush.msra.mxu0 0.0
  %1502 = vmatpush.msra.mxu0 0.0
  %1503 = vmatpush.msra.mxu0 0.0
  %1504 = vmatpush.msra.mxu0 0.0
  %1505 = vmatpush.msra.mxu0 0.0
  %1506 = vmatpush.msra.mxu0 0.0
  %1507 = vmatpush.msra.mxu0 0.0
  %1508 = vmatpush.msra.mxu0 0.0
  %1509 = vmatpush.msra.mxu0 0.0
  %1510 = vmatpush.msra.mxu0 0.0
  %1511 = vmatpush.msra.mxu0 0.0
  %1512 = vmatpush.msra.mxu0 0.0
  %1513 = vmatpush.msra.mxu0 0.0
  %1514 = vmatpush.msra.mxu0 %v1499
  %1515 = vmatpush.msra.mxu0 %v1485
  %1516 = vmatpush.msra.mxu0 %v1483
  %1517 = vmatmul.f32.gmra.mxu0 %v1491
  %v1518 = vpop.f32.mrf.mxu0
  %v1519 = vadd.f32 0.0, %v1518
  %1520 = vmatmul.f32.gmra.mxu0 %v1494
  %v1521 = vpop.f32.mrf.mxu0
  %v1522 = vadd.f32 0.0, %v1521
  %1523 = vmatmul.f32.gmra.mxu0 %v1497
  %v1524 = vpop.f32.mrf.mxu0
  %v1525 = vadd.f32 0.0, %v1524
  %1526 = vdwg.mxu0
  %1527 = vrot.lane.b32.xlu0 %v1188, 112
  %v1528 = vpop.permute.xlu0 %1527
  %1529 = vrot.lane.b32.xlu0 %v1191, 112
  %v1530 = vpop.permute.xlu0 %1529
  %1531 = vrot.lane.b32.xlu0 %v1194, 112
  %v1532 = vpop.permute.xlu0 %1531
  %1533 = vrot.lane.b32.xlu0 %v1188, 80
  %v1534 = vpop.permute.xlu0 %1533
  %1535 = vrot.lane.b32.xlu0 %v1191, 80
  %v1536 = vpop.permute.xlu0 %1535
  %1537 = vrot.lane.b32.xlu0 %v1194, 80
  %v1538 = vpop.permute.xlu0 %1537
  %v1539 = vsel %vm158, %v1528, 0
  %v1541 = vsel %vm158, %v1530, 0
  %v1543 = vsel %vm158, %v1532, 0
  %v1545 = vsel %vm158, %v1534, 0
  %v1547 = vsel %vm158, %v1536, 0
  %v1549 = vsel %vm158, %v1538, 0
  %1551 = vmatpush.xpose.msra.mxu0 0.0
  %1552 = vmatpush.xpose.msra.mxu0 0.0
  %1553 = vmatpush.xpose.msra.mxu0 0.0
  %1554 = vmatpush.xpose.msra.mxu0 0.0
  %1555 = vmatpush.xpose.msra.mxu0 0.0
  %1556 = vmatpush.xpose.msra.mxu0 0.0
  %1557 = vmatpush.xpose.msra.mxu0 0.0
  %1558 = vmatpush.xpose.msra.mxu0 0.0
  %1559 = vmatpush.xpose.msra.mxu0 0.0
  %1560 = vmatpush.xpose.msra.mxu0 0.0
  %1561 = vmatpush.xpose.msra.mxu0 0.0
  %1562 = vmatpush.xpose.msra.mxu0 0.0
  %1563 = vmatpush.xpose.msra.mxu0 0.0
  %1564 = vmatpush.xpose.msra.mxu0 %v1549
  %1565 = vmatpush.xpose.msra.mxu0 %v1547
  %1566 = vmatpush.xpose.msra.mxu0 %v1545
  %1567 = vmatmul.f32.gmra.mxu0 %v1539
  %v1568 = vpop.f32.mrf.mxu0
  %v1569 = vadd.f32 %v104, %v1568
  %1570 = vmatmul.f32.gmra.mxu0 %v1541
  %v1571 = vpop.f32.mrf.mxu0
  %v1572 = vadd.f32 %v105, %v1571
  %1573 = vmatmul.f32.gmra.mxu0 %v1543
  %v1574 = vpop.f32.mrf.mxu0
  %v1575 = vadd.f32 %v106, %v1574
  %1576 = vdwg.mxu0
  %v1577 = vsel %vm197, %v1569, -inf
  %1578 = vmax.xlane.f32.xlu0 %v1577
  %v1579 = vpop.xlane.xlu0 %1578
  %v1580 = vsel %vm197, %v1572, -inf
  %1581 = vmax.xlane.f32.xlu0 %v1580
  %v1582 = vpop.xlane.xlu0 %1581
  %v1583 = vsel %vm204, %v1575, -inf
  %1584 = vmax.xlane.f32.xlu0 %v1583
  %v1585 = vpop.xlane.xlu0 %1584
  %v1586 = vsub.f32 %v1569, %v1579
  %v1587 = vsub.f32 %v1572, %v1582
  %v1588 = vsub.f32 %v1575, %v1585
  %v1589 = vmul.f32 %v1586, 1.442695
  %v1590 = vpow.pop %v1589
  %v1591 = vmul.f32 %v1587, 1.442695
  %v1592 = vpow.pop %v1591
  %v1593 = vmul.f32 %v1588, 1.442695
  %v1594 = vpow.pop %v1593
  %v1595 = vsel %vm197, %v1590, 0.0
  %1596 = vadd.xlane.f32.xlu0 %v1595
  %v1597 = vpop.xlane.xlu0 %1596
  %v1598 = vsel %vm197, %v1592, 0.0
  %1599 = vadd.xlane.f32.xlu0 %v1598
  %v1600 = vpop.xlane.xlu0 %1599
  %v1601 = vsel %vm204, %v1594, 0.0
  %1602 = vadd.xlane.f32.xlu0 %v1601
  %v1603 = vpop.xlane.xlu0 %1602
  %v1604 = vrcp.pop %v1597
  %v1605 = vmul.f32 %v1597, %v1604
  %v1606 = vsub.f32 1.0, %v1605
  %v1607 = vmul.f32 %v1604, %v1606
  %v1608 = vadd.f32 %v1604, %v1607
  %vm1609 = vweird.f32 %v1597
  %vm1610 = vweird.f32 %v1604
  %vm1611 = vmor %vm1609, %vm1610
  %v1612 = vsel %vm1611, %v1604, %v1608
  %v1613 = vand.u32 2147483647, %v1597
  %vm1614 = vcmp.eq.f32.partialorder %v1613, 8.507059e+37
  %v1615 = vand.u32 %v1597, 2147483648
  %v1616 = vor.u32 1.1754944e-38, %v1615
  %v1617 = vsel %vm1614, %v1616, %v1612
  %v1618 = vmul.f32 %v1590, %v1617
  %v1619 = vrcp.pop %v1600
  %v1620 = vmul.f32 %v1600, %v1619
  %v1621 = vsub.f32 1.0, %v1620
  %v1622 = vmul.f32 %v1619, %v1621
  %v1623 = vadd.f32 %v1619, %v1622
  %vm1624 = vweird.f32 %v1600
  %vm1625 = vweird.f32 %v1619
  %vm1626 = vmor %vm1624, %vm1625
  %v1627 = vsel %vm1626, %v1619, %v1623
  %v1628 = vand.u32 2147483647, %v1600
  %vm1629 = vcmp.eq.f32.partialorder %v1628, 8.507059e+37
  %v1630 = vand.u32 %v1600, 2147483648
  %v1631 = vor.u32 1.1754944e-38, %v1630
  %v1632 = vsel %vm1629, %v1631, %v1627
  %v1633 = vmul.f32 %v1592, %v1632
  %v1634 = vrcp.pop %v1603
  %v1635 = vmul.f32 %v1603, %v1634
  %v1636 = vsub.f32 1.0, %v1635
  %v1637 = vmul.f32 %v1634, %v1636
  %v1638 = vadd.f32 %v1634, %v1637
  %vm1639 = vweird.f32 %v1603
  %vm1640 = vweird.f32 %v1634
  %vm1641 = vmor %vm1639, %vm1640
  %v1642 = vsel %vm1641, %v1634, %v1638
  %v1643 = vand.u32 2147483647, %v1603
  %vm1644 = vcmp.eq.f32.partialorder %v1643, 8.507059e+37
  %v1645 = vand.u32 %v1603, 2147483648
  %v1646 = vor.u32 1.1754944e-38, %v1645
  %v1647 = vsel %vm1644, %v1646, %v1642
  %v1648 = vmul.f32 %v1594, %v1647
  %1649 = vrot.lane.b32.xlu0 %v1188, 48
  %v1650 = vpop.permute.xlu0 %1649
  %1651 = vrot.lane.b32.xlu0 %v1191, 48
  %v1652 = vpop.permute.xlu0 %1651
  %1653 = vrot.lane.b32.xlu0 %v1194, 48
  %v1654 = vpop.permute.xlu0 %1653
  %v1658 = vsel %vm197, %v1618, 0
  %v1661 = vsel %vm197, %v1633, 0
  %v1664 = vsel %vm197, %v1648, 0
  %v1666 = vsel %vm288, %v1654, 0
  %1668 = vmatpush.msra.mxu0 0.0
  %1669 = vmatpush.msra.mxu0 0.0
  %1670 = vmatpush.msra.mxu0 0.0
  %1671 = vmatpush.msra.mxu0 0.0
  %1672 = vmatpush.msra.mxu0 0.0
  %1673 = vmatpush.msra.mxu0 0.0
  %1674 = vmatpush.msra.mxu0 0.0
  %1675 = vmatpush.msra.mxu0 0.0
  %1676 = vmatpush.msra.mxu0 0.0
  %1677 = vmatpush.msra.mxu0 0.0
  %1678 = vmatpush.msra.mxu0 0.0
  %1679 = vmatpush.msra.mxu0 0.0
  %1680 = vmatpush.msra.mxu0 0.0
  %1681 = vmatpush.msra.mxu0 %v1666
  %1682 = vmatpush.msra.mxu0 %v1652
  %1683 = vmatpush.msra.mxu0 %v1650
  %1684 = vmatmul.f32.gmra.mxu0 %v1658
  %v1685 = vpop.f32.mrf.mxu0
  %v1686 = vadd.f32 0.0, %v1685
  %1687 = vmatmul.f32.gmra.mxu0 %v1661
  %v1688 = vpop.f32.mrf.mxu0
  %v1689 = vadd.f32 0.0, %v1688
  %1690 = vmatmul.f32.gmra.mxu0 %v1664
  %v1691 = vpop.f32.mrf.mxu0
  %v1692 = vadd.f32 0.0, %v1691
  %1693 = vdwg.mxu0
  %1694 = vrot.lane.b32.xlu0 %v1188, 104
  %v1695 = vpop.permute.xlu0 %1694
  %1696 = vrot.lane.b32.xlu0 %v1191, 104
  %v1697 = vpop.permute.xlu0 %1696
  %1698 = vrot.lane.b32.xlu0 %v1194, 104
  %v1699 = vpop.permute.xlu0 %1698
  %1700 = vrot.lane.b32.xlu0 %v1188, 72
  %v1701 = vpop.permute.xlu0 %1700
  %1702 = vrot.lane.b32.xlu0 %v1191, 72
  %v1703 = vpop.permute.xlu0 %1702
  %1704 = vrot.lane.b32.xlu0 %v1194, 72
  %v1705 = vpop.permute.xlu0 %1704
  %v1706 = vsel %vm158, %v1695, 0
  %v1708 = vsel %vm158, %v1697, 0
  %v1710 = vsel %vm158, %v1699, 0
  %v1712 = vsel %vm158, %v1701, 0
  %v1714 = vsel %vm158, %v1703, 0
  %v1716 = vsel %vm158, %v1705, 0
  %1718 = vmatpush.xpose.msra.mxu0 0.0
  %1719 = vmatpush.xpose.msra.mxu0 0.0
  %1720 = vmatpush.xpose.msra.mxu0 0.0
  %1721 = vmatpush.xpose.msra.mxu0 0.0
  %1722 = vmatpush.xpose.msra.mxu0 0.0
  %1723 = vmatpush.xpose.msra.mxu0 0.0
  %1724 = vmatpush.xpose.msra.mxu0 0.0
  %1725 = vmatpush.xpose.msra.mxu0 0.0
  %1726 = vmatpush.xpose.msra.mxu0 0.0
  %1727 = vmatpush.xpose.msra.mxu0 0.0
  %1728 = vmatpush.xpose.msra.mxu0 0.0
  %1729 = vmatpush.xpose.msra.mxu0 0.0
  %1730 = vmatpush.xpose.msra.mxu0 0.0
  %1731 = vmatpush.xpose.msra.mxu0 %v1716
  %1732 = vmatpush.xpose.msra.mxu0 %v1714
  %1733 = vmatpush.xpose.msra.mxu0 %v1712
  %1734 = vmatmul.f32.gmra.mxu0 %v1706
  %v1735 = vpop.f32.mrf.mxu0
  %v1736 = vadd.f32 %v104, %v1735
  %1737 = vmatmul.f32.gmra.mxu0 %v1708
  %v1738 = vpop.f32.mrf.mxu0
  %v1739 = vadd.f32 %v105, %v1738
  %1740 = vmatmul.f32.gmra.mxu0 %v1710
  %v1741 = vpop.f32.mrf.mxu0
  %v1742 = vadd.f32 %v106, %v1741
  %1743 = vdwg.mxu0
  %v1744 = vsel %vm197, %v1736, -inf
  %1745 = vmax.xlane.f32.xlu0 %v1744
  %v1746 = vpop.xlane.xlu0 %1745
  %v1747 = vsel %vm197, %v1739, -inf
  %1748 = vmax.xlane.f32.xlu0 %v1747
  %v1749 = vpop.xlane.xlu0 %1748
  %v1750 = vsel %vm204, %v1742, -inf
  %1751 = vmax.xlane.f32.xlu0 %v1750
  %v1752 = vpop.xlane.xlu0 %1751
  %v1753 = vsub.f32 %v1736, %v1746
  %v1754 = vsub.f32 %v1739, %v1749
  %v1755 = vsub.f32 %v1742, %v1752
  %v1756 = vmul.f32 %v1753, 1.442695
  %v1757 = vpow.pop %v1756
  %v1758 = vmul.f32 %v1754, 1.442695
  %v1759 = vpow.pop %v1758
  %v1760 = vmul.f32 %v1755, 1.442695
  %v1761 = vpow.pop %v1760
  %v1762 = vsel %vm197, %v1757, 0.0
  %1763 = vadd.xlane.f32.xlu0 %v1762
  %v1764 = vpop.xlane.xlu0 %1763
  %v1765 = vsel %vm197, %v1759, 0.0
  %1766 = vadd.xlane.f32.xlu0 %v1765
  %v1767 = vpop.xlane.xlu0 %1766
  %v1768 = vsel %vm204, %v1761, 0.0
  %1769 = vadd.xlane.f32.xlu0 %v1768
  %v1770 = vpop.xlane.xlu0 %1769
  %v1771 = vrcp.pop %v1764
  %v1772 = vmul.f32 %v1764, %v1771
  %v1773 = vsub.f32 1.0, %v1772
  %v1774 = vmul.f32 %v1771, %v1773
  %v1775 = vadd.f32 %v1771, %v1774
  %vm1776 = vweird.f32 %v1764
  %vm1777 = vweird.f32 %v1771
  %vm1778 = vmor %vm1776, %vm1777
  %v1779 = vsel %vm1778, %v1771, %v1775
  %v1780 = vand.u32 2147483647, %v1764
  %vm1781 = vcmp.eq.f32.partialorder %v1780, 8.507059e+37
  %v1782 = vand.u32 %v1764, 2147483648
  %v1783 = vor.u32 1.1754944e-38, %v1782
  %v1784 = vsel %vm1781, %v1783, %v1779
  %v1785 = vmul.f32 %v1757, %v1784
  %v1786 = vrcp.pop %v1767
  %v1787 = vmul.f32 %v1767, %v1786
  %v1788 = vsub.f32 1.0, %v1787
  %v1789 = vmul.f32 %v1786, %v1788
  %v1790 = vadd.f32 %v1786, %v1789
  %vm1791 = vweird.f32 %v1767
  %vm1792 = vweird.f32 %v1786
  %vm1793 = vmor %vm1791, %vm1792
  %v1794 = vsel %vm1793, %v1786, %v1790
  %v1795 = vand.u32 2147483647, %v1767
  %vm1796 = vcmp.eq.f32.partialorder %v1795, 8.507059e+37
  %v1797 = vand.u32 %v1767, 2147483648
  %v1798 = vor.u32 1.1754944e-38, %v1797
  %v1799 = vsel %vm1796, %v1798, %v1794
  %v1800 = vmul.f32 %v1759, %v1799
  %v1801 = vrcp.pop %v1770
  %v1802 = vmul.f32 %v1770, %v1801
  %v1803 = vsub.f32 1.0, %v1802
  %v1804 = vmul.f32 %v1801, %v1803
  %v1805 = vadd.f32 %v1801, %v1804
  %vm1806 = vweird.f32 %v1770
  %vm1807 = vweird.f32 %v1801
  %vm1808 = vmor %vm1806, %vm1807
  %v1809 = vsel %vm1808, %v1801, %v1805
  %v1810 = vand.u32 2147483647, %v1770
  %vm1811 = vcmp.eq.f32.partialorder %v1810, 8.507059e+37
  %v1812 = vand.u32 %v1770, 2147483648
  %v1813 = vor.u32 1.1754944e-38, %v1812
  %v1814 = vsel %vm1811, %v1813, %v1809
  %v1815 = vmul.f32 %v1761, %v1814
  %1816 = vrot.lane.b32.xlu0 %v1188, 40
  %v1817 = vpop.permute.xlu0 %1816
  %1818 = vrot.lane.b32.xlu0 %v1191, 40
  %v1819 = vpop.permute.xlu0 %1818
  %1820 = vrot.lane.b32.xlu0 %v1194, 40
  %v1821 = vpop.permute.xlu0 %1820
  %v1825 = vsel %vm197, %v1785, 0
  %v1828 = vsel %vm197, %v1800, 0
  %v1831 = vsel %vm197, %v1815, 0
  %v1833 = vsel %vm288, %v1821, 0
  %1835 = vmatpush.msra.mxu0 0.0
  %1836 = vmatpush.msra.mxu0 0.0
  %1837 = vmatpush.msra.mxu0 0.0
  %1838 = vmatpush.msra.mxu0 0.0
  %1839 = vmatpush.msra.mxu0 0.0
  %1840 = vmatpush.msra.mxu0 0.0
  %1841 = vmatpush.msra.mxu0 0.0
  %1842 = vmatpush.msra.mxu0 0.0
  %1843 = vmatpush.msra.mxu0 0.0
  %1844 = vmatpush.msra.mxu0 0.0
  %1845 = vmatpush.msra.mxu0 0.0
  %1846 = vmatpush.msra.mxu0 0.0
  %1847 = vmatpush.msra.mxu0 0.0
  %1848 = vmatpush.msra.mxu0 %v1833
  %1849 = vmatpush.msra.mxu0 %v1819
  %1850 = vmatpush.msra.mxu0 %v1817
  %1851 = vmatmul.f32.gmra.mxu0 %v1825
  %v1852 = vpop.f32.mrf.mxu0
  %v1853 = vadd.f32 0.0, %v1852
  %1854 = vmatmul.f32.gmra.mxu0 %v1828
  %v1855 = vpop.f32.mrf.mxu0
  %v1856 = vadd.f32 0.0, %v1855
  %1857 = vmatmul.f32.gmra.mxu0 %v1831
  %v1858 = vpop.f32.mrf.mxu0
  %v1859 = vadd.f32 0.0, %v1858
  %1860 = vdwg.mxu0
  %1864 = vrot.lane.b32.xlu0 %v1519, 8
  %v1865 = vpop.permute.xlu0 %1864
  %1866 = vrot.lane.b32.xlu0 %v1522, 8
  %v1867 = vpop.permute.xlu0 %1866
  %1868 = vrot.lane.b32.xlu0 %v1525, 8
  %v1869 = vpop.permute.xlu0 %1868
  %1876 = vrot.lane.b32.xlu0 %v1686, 16
  %v1877 = vpop.permute.xlu0 %1876
  %1878 = vrot.lane.b32.xlu0 %v1689, 16
  %v1879 = vpop.permute.xlu0 %1878
  %1880 = vrot.lane.b32.xlu0 %v1692, 16
  %v1881 = vpop.permute.xlu0 %1880
  %1888 = vrot.lane.b32.xlu0 %v1853, 24
  %v1889 = vpop.permute.xlu0 %1888
  %1890 = vrot.lane.b32.xlu0 %v1856, 24
  %v1891 = vpop.permute.xlu0 %1890
  %1892 = vrot.lane.b32.xlu0 %v1859, 24
  %v1893 = vpop.permute.xlu0 %1892
  %v1897 = vsel %vm158, %v1352, %v1865
  %v1898 = vsel %vm158, %v1355, %v1867
  %v1899 = vsel %vm158, %v1358, %v1869
  %v1900 = vsel %vm857, %v1897, %v1877
  %v1901 = vsel %vm857, %v1898, %v1879
  %v1902 = vsel %vm857, %v1899, %v1881
  %v1903 = vsel %vm861, %v1900, %v1889
  %v1904 = vsel %vm861, %v1901, %v1891
  %v1905 = vsel %vm861, %v1902, %v1893
  %s1906 = scalar_lea.vmem %s3, 32
  %v1907 = vld [vmem:[%s1906] sm:$0xff]
  %v1908 = vld [vmem:[%s1906 + $0x8] sm:$0xff]
  %v1909 = vld [vmem:[%s1906 + $0x10] sm:$0xff]
  %v1910 = vld [vmem:[%s1906 + $0x18] sm:$0xff]
  %v1911 = vperm.slane %v1154, 1
  %v1913 = vsel %vm113, %v1903, 0
  %v1916 = vsel %vm113, %v1904, 0
  %v1919 = vsel %vm113, %v1905, 0
  %1921 = vmatpush.msra.mxu0 0.0
  %1922 = vmatpush.msra.mxu0 0.0
  %1923 = vmatpush.msra.mxu0 0.0
  %1924 = vmatpush.msra.mxu0 0.0
  %1925 = vmatpush.msra.mxu0 0.0
  %1926 = vmatpush.msra.mxu0 0.0
  %1927 = vmatpush.msra.mxu0 0.0
  %1928 = vmatpush.msra.mxu0 0.0
  %1929 = vmatpush.msra.mxu0 0.0
  %1930 = vmatpush.msra.mxu0 0.0
  %1931 = vmatpush.msra.mxu0 0.0
  %1932 = vmatpush.msra.mxu0 0.0
  %1933 = vmatpush.msra.mxu0 %v1910
  %1934 = vmatpush.msra.mxu0 %v1909
  %1935 = vmatpush.msra.mxu0 %v1908
  %1936 = vmatpush.msra.mxu0 %v1907
  %1937 = vmatmul.f32.gmra.mxu0 %v1913
  %v1938 = vpop.f32.mrf.mxu0
  %v1939 = vadd.f32 %v1911, %v1938
  %1940 = vmatmul.f32.gmra.mxu0 %v1916
  %v1941 = vpop.f32.mrf.mxu0
  %v1942 = vadd.f32 %v1911, %v1941
  %1943 = vmatmul.f32.gmra.mxu0 %v1919
  %v1944 = vpop.f32.mrf.mxu0
  %v1945 = vadd.f32 %v1911, %v1944
  %1946 = vdwg.mxu0
  %v1947 = vadd.f32 %v1150, %v1939
  %v1948 = vadd.f32 %v1151, %v1942
  %v1949 = vadd.f32 %v1152, %v1945
  %v1950 = vsel %vm113, %v1947, 0.0
  %1951 = vadd.xlane.f32.xlu0 %v1950
  %v1952 = vpop.xlane.xlu0 %1951
  %v1953 = vsel %vm113, %v1948, 0.0
  %1954 = vadd.xlane.f32.xlu0 %v1953
  %v1955 = vpop.xlane.xlu0 %1954
  %v1956 = vsel %vm914, %v1949, 0.0
  %1957 = vadd.xlane.f32.xlu0 %v1956
  %v1958 = vpop.xlane.xlu0 %1957
  %v1959 = vmul.f32 %v1952, %v924
  %v1960 = vmul.f32 %v1955, %v924
  %v1961 = vmul.f32 %v1958, %v924
  %v1962 = vsub.f32 %v1947, %v1959
  %v1963 = vsub.f32 %v1948, %v1960
  %v1964 = vsub.f32 %v1949, %v1961
  %v1965 = vmul.f32 %v1962, %v1962
  %v1966 = vmul.f32 %v1963, %v1963
  %v1967 = vmul.f32 %v1964, %v1964
  %v1968 = vsel %vm113, %v1965, 0.0
  %1969 = vadd.xlane.f32.xlu0 %v1968
  %v1970 = vpop.xlane.xlu0 %1969
  %v1971 = vsel %vm113, %v1966, 0.0
  %1972 = vadd.xlane.f32.xlu0 %v1971
  %v1973 = vpop.xlane.xlu0 %1972
  %v1974 = vsel %vm914, %v1967, 0.0
  %1975 = vadd.xlane.f32.xlu0 %v1974
  %v1976 = vpop.xlane.xlu0 %1975
  %v1977 = vmul.f32 %v1970, %v924
  %v1978 = vmul.f32 %v1973, %v924
  %v1979 = vmul.f32 %v1976, %v924
  %v1980 = vadd.f32 %v1977, 1e-05
  %v1981 = vadd.f32 %v1978, 1e-05
  %v1982 = vadd.f32 %v1979, 1e-05
  %v1983 = vrsqrt.pop %v1980
  %v1984 = vmul.f32 %v1983, %v1980
  %v1985 = vmul.f32 %v1984, %v1983
  %v1986 = vmul.f32 0.5, %v1985
  %v1987 = vsub.f32 1.5, %v1986
  %v1988 = vmul.f32 %v1983, %v1987
  %vm1989 = vweird.f32 %v1980
  %vm1990 = vweird.f32 %v1983
  %vm1991 = vmor %vm1989, %vm1990
  %v1992 = vsel %vm1991, %v1983, %v1988
  %v1993 = vrsqrt.pop %v1981
  %v1994 = vmul.f32 %v1993, %v1981
  %v1995 = vmul.f32 %v1994, %v1993
  %v1996 = vmul.f32 0.5, %v1995
  %v1997 = vsub.f32 1.5, %v1996
  %v1998 = vmul.f32 %v1993, %v1997
  %vm1999 = vweird.f32 %v1981
  %vm2000 = vweird.f32 %v1993
  %vm2001 = vmor %vm1999, %vm2000
  %v2002 = vsel %vm2001, %v1993, %v1998
  %v2003 = vrsqrt.pop %v1982
  %v2004 = vmul.f32 %v2003, %v1982
  %v2005 = vmul.f32 %v2004, %v2003
  %v2006 = vmul.f32 0.5, %v2005
  %v2007 = vsub.f32 1.5, %v2006
  %v2008 = vmul.f32 %v2003, %v2007
  %vm2009 = vweird.f32 %v1982
  %vm2010 = vweird.f32 %v2003
  %vm2011 = vmor %vm2009, %vm2010
  %v2012 = vsel %vm2011, %v2003, %v2008
  %v2013 = vmul.f32 %v1962, %v1992
  %v2014 = vmul.f32 %v1963, %v2002
  %v2015 = vmul.f32 %v1964, %v2012
  %v2016 = vperm.slane %v1154, 4
  %v2017 = vmul.f32 %v2013, %v2016
  %v2018 = vmul.f32 %v2014, %v2016
  %v2019 = vmul.f32 %v2015, %v2016
  %v2020 = vperm.slane %v1154, 5
  %v2021 = vadd.f32 %v2017, %v2020
  %v2022 = vadd.f32 %v2018, %v2020
  %v2023 = vadd.f32 %v2019, %v2020
  %s2024 = scalar_lea.vmem %s4, 32
  %v2025 = vld [vmem:[%s2024] sm:$0xff]
  %v2026 = vld [vmem:[%s2024 + $0x8] sm:$0xff]
  %v2027 = vld [vmem:[%s2024 + $0x10] sm:$0xff]
  %v2028 = vld [vmem:[%s2024 + $0x18] sm:$0xff]
  %v2029 = vperm.slane %v1154, 2
  %v2031 = vsel %vm113, %v2021, 0
  %v2034 = vsel %vm113, %v2022, 0
  %v2037 = vsel %vm113, %v2023, 0
  %2039 = vmatpush.msra.mxu0 0.0
  %2040 = vmatpush.msra.mxu0 0.0
  %2041 = vmatpush.msra.mxu0 0.0
  %2042 = vmatpush.msra.mxu0 0.0
  %2043 = vmatpush.msra.mxu0 0.0
  %2044 = vmatpush.msra.mxu0 0.0
  %2045 = vmatpush.msra.mxu0 0.0
  %2046 = vmatpush.msra.mxu0 0.0
  %2047 = vmatpush.msra.mxu0 0.0
  %2048 = vmatpush.msra.mxu0 0.0
  %2049 = vmatpush.msra.mxu0 0.0
  %2050 = vmatpush.msra.mxu0 0.0
  %2051 = vmatpush.msra.mxu0 %v2028
  %2052 = vmatpush.msra.mxu0 %v2027
  %2053 = vmatpush.msra.mxu0 %v2026
  %2054 = vmatpush.msra.mxu0 %v2025
  %2055 = vmatmul.f32.gmra.mxu0 %v2031
  %v2056 = vpop.f32.mrf.mxu0
  %v2057 = vadd.f32 %v2029, %v2056
  %2058 = vmatmul.f32.gmra.mxu0 %v2034
  %v2059 = vpop.f32.mrf.mxu0
  %v2060 = vadd.f32 %v2029, %v2059
  %2061 = vmatmul.f32.gmra.mxu0 %v2037
  %v2062 = vpop.f32.mrf.mxu0
  %v2063 = vadd.f32 %v2029, %v2062
  %2064 = vdwg.mxu0
  %v2065 = vmax.f32 %v2057, 0.0
  %v2066 = vmax.f32 %v2060, 0.0
  %v2067 = vmax.f32 %v2063, 0.0
  %s2068 = scalar_lea.vmem %s5, 128
  %v2069 = vld [vmem:[%s2068] sm:$0xff]
  %v2070 = vld [vmem:[%s2068 + $0x8] sm:$0xff]
  %v2071 = vld [vmem:[%s2068 + $0x10] sm:$0xff]
  %v2072 = vld [vmem:[%s2068 + $0x18] sm:$0xff]
  %v2073 = vld [vmem:[%s2068 + $0x20] sm:$0xff]
  %v2074 = vld [vmem:[%s2068 + $0x28] sm:$0xff]
  %v2075 = vld [vmem:[%s2068 + $0x30] sm:$0xff]
  %v2076 = vld [vmem:[%s2068 + $0x38] sm:$0xff]
  %v2077 = vld [vmem:[%s2068 + $0x40] sm:$0xff]
  %v2078 = vld [vmem:[%s2068 + $0x48] sm:$0xff]
  %v2079 = vld [vmem:[%s2068 + $0x50] sm:$0xff]
  %v2080 = vld [vmem:[%s2068 + $0x58] sm:$0xff]
  %v2081 = vld [vmem:[%s2068 + $0x60] sm:$0xff]
  %v2082 = vld [vmem:[%s2068 + $0x68] sm:$0xff]
  %v2083 = vld [vmem:[%s2068 + $0x70] sm:$0xff]
  %v2084 = vld [vmem:[%s2068 + $0x78] sm:$0xff]
  %v2085 = vperm.slane %v1154, 3
  %2086 = vmatpush.msra.mxu0 %v2084
  %2087 = vmatpush.msra.mxu0 %v2083
  %2088 = vmatpush.msra.mxu0 %v2082
  %2089 = vmatpush.msra.mxu0 %v2081
  %2090 = vmatpush.msra.mxu0 %v2080
  %2091 = vmatpush.msra.mxu0 %v2079
  %2092 = vmatpush.msra.mxu0 %v2078
  %2093 = vmatpush.msra.mxu0 %v2077
  %2094 = vmatpush.msra.mxu0 %v2076
  %2095 = vmatpush.msra.mxu0 %v2075
  %2096 = vmatpush.msra.mxu0 %v2074
  %2097 = vmatpush.msra.mxu0 %v2073
  %2098 = vmatpush.msra.mxu0 %v2072
  %2099 = vmatpush.msra.mxu0 %v2071
  %2100 = vmatpush.msra.mxu0 %v2070
  %2101 = vmatpush.msra.mxu0 %v2069
  %2102 = vmatmul.f32.gmra.mxu0 %v2065
  %v2103 = vpop.f32.mrf.mxu0
  %v2104 = vadd.f32 %v2085, %v2103
  %2105 = vmatmul.f32.gmra.mxu0 %v2066
  %v2106 = vpop.f32.mrf.mxu0
  %v2107 = vadd.f32 %v2085, %v2106
  %2108 = vmatmul.f32.gmra.mxu0 %v2067
  %v2109 = vpop.f32.mrf.mxu0
  %v2110 = vadd.f32 %v2085, %v2109
  %2111 = vdwg.mxu0
  %v2112 = vadd.f32 %v2021, %v2104
  %v2113 = vadd.f32 %v2022, %v2107
  %v2114 = vadd.f32 %v2023, %v2110
  %v2115 = vsel %vm113, %v2112, 0.0
  %2116 = vadd.xlane.f32.xlu0 %v2115
  %v2117 = vpop.xlane.xlu0 %2116
  %v2118 = vsel %vm113, %v2113, 0.0
  %2119 = vadd.xlane.f32.xlu0 %v2118
  %v2120 = vpop.xlane.xlu0 %2119
  %v2121 = vsel %vm914, %v2114, 0.0
  %2122 = vadd.xlane.f32.xlu0 %v2121
  %v2123 = vpop.xlane.xlu0 %2122
  %v2124 = vmul.f32 %v2117, %v924
  %v2125 = vmul.f32 %v2120, %v924
  %v2126 = vmul.f32 %v2123, %v924
  %v2127 = vsub.f32 %v2112, %v2124
  %v2128 = vsub.f32 %v2113, %v2125
  %v2129 = vsub.f32 %v2114, %v2126
  %v2130 = vmul.f32 %v2127, %v2127
  %v2131 = vmul.f32 %v2128, %v2128
  %v2132 = vmul.f32 %v2129, %v2129
  %v2133 = vsel %vm113, %v2130, 0.0
  %2134 = vadd.xlane.f32.xlu0 %v2133
  %v2135 = vpop.xlane.xlu0 %2134
  %v2136 = vsel %vm113, %v2131, 0.0
  %2137 = vadd.xlane.f32.xlu0 %v2136
  %v2138 = vpop.xlane.xlu0 %2137
  %v2139 = vsel %vm914, %v2132, 0.0
  %2140 = vadd.xlane.f32.xlu0 %v2139
  %v2141 = vpop.xlane.xlu0 %2140
  %v2142 = vmul.f32 %v2135, %v924
  %v2143 = vmul.f32 %v2138, %v924
  %v2144 = vmul.f32 %v2141, %v924
  %v2145 = vadd.f32 %v2142, 1e-05
  %v2146 = vadd.f32 %v2143, 1e-05
  %v2147 = vadd.f32 %v2144, 1e-05
  %v2148 = vrsqrt.pop %v2145
  %v2149 = vmul.f32 %v2148, %v2145
  %v2150 = vmul.f32 %v2149, %v2148
  %v2151 = vmul.f32 0.5, %v2150
  %v2152 = vsub.f32 1.5, %v2151
  %v2153 = vmul.f32 %v2148, %v2152
  %vm2154 = vweird.f32 %v2145
  %vm2155 = vweird.f32 %v2148
  %vm2156 = vmor %vm2154, %vm2155
  %v2157 = vsel %vm2156, %v2148, %v2153
  %v2158 = vrsqrt.pop %v2146
  %v2159 = vmul.f32 %v2158, %v2146
  %v2160 = vmul.f32 %v2159, %v2158
  %v2161 = vmul.f32 0.5, %v2160
  %v2162 = vsub.f32 1.5, %v2161
  %v2163 = vmul.f32 %v2158, %v2162
  %vm2164 = vweird.f32 %v2146
  %vm2165 = vweird.f32 %v2158
  %vm2166 = vmor %vm2164, %vm2165
  %v2167 = vsel %vm2166, %v2158, %v2163
  %v2168 = vrsqrt.pop %v2147
  %v2169 = vmul.f32 %v2168, %v2147
  %v2170 = vmul.f32 %v2169, %v2168
  %v2171 = vmul.f32 0.5, %v2170
  %v2172 = vsub.f32 1.5, %v2171
  %v2173 = vmul.f32 %v2168, %v2172
  %vm2174 = vweird.f32 %v2147
  %vm2175 = vweird.f32 %v2168
  %vm2176 = vmor %vm2174, %vm2175
  %v2177 = vsel %vm2176, %v2168, %v2173
  %v2178 = vmul.f32 %v2127, %v2157
  %v2179 = vmul.f32 %v2128, %v2167
  %v2180 = vmul.f32 %v2129, %v2177
  %v2181 = vperm.slane %v1154, 6
  %v2182 = vmul.f32 %v2178, %v2181
  %v2183 = vmul.f32 %v2179, %v2181
  %v2184 = vmul.f32 %v2180, %v2181
  %v2185 = vperm.slane %v1154, 7
  %v2186 = vadd.f32 %v2182, %v2185
  %v2187 = vadd.f32 %v2183, %v2185
  %v2188 = vadd.f32 %v2184, %v2185
  %2189 = vst.msk [vmem:[%s7] sm:$0xff] %vm113, %v2186
  %2190 = vst.msk [vmem:[%s7 + $0x8] sm:$0xff] %vm113, %v2187
  %2191 = vst.msk [vmem:[%s7 + $0x10] sm:$0x3f] %vm914, %v2188
  // Predicated region
  $region30: #{append_encoder_forward.1} parent=0 // pred_check
    _
  $region31: #{append_encoder_forward.1} parent=0 // pred_check_branch
    %2193 = sbr.rel (0) target = $region33
  $region32: #{append_encoder_forward.1} parent=0 // pred_region
    _
  $region33: #{append_encoder_forward.1} parent=0 // pred_fallthru
    _
  // Predicated region
  $region34: #{append_encoder_forward.1} parent=0 // pred_check
    _
  $region35: #{append_encoder_forward.1} parent=0 // pred_check_branch
    %2195 = sbr.rel (0) target = $region37
  $region36: #{append_encoder_forward.1} parent=0 // pred_region
    _
  $region37: #{append_encoder_forward.1} parent=0 // pred_fallthru
    _

</llo_original>
